<compile_context>
chip_gen: v7x
topology: tpu7x:2x2x1
jax: 0.10.0
libtpu: 0.0.40
codegen_flags: <defaults>
</compile_context>

<pallas_src>
import functools
import math

import jax
import jax.numpy as jnp
from jax.experimental import pallas as pl
from jax.experimental.pallas import tpu as pltpu

LN_EPS = 1e-5  # torch.nn.LayerNorm default


def _layernorm(z, gamma, beta):
    mean = jnp.mean(z, axis=-1, keepdims=True)
    var = jnp.mean((z - mean) ** 2, axis=-1, keepdims=True)
    return (z - mean) * jax.lax.rsqrt(var + LN_EPS) * gamma + beta


def _round_up(x, m):
    return ((x + m - 1) // m) * m


def _vmem_limit(est_bytes):
    return int(min(max(2 * est_bytes, 32 * 1024 * 1024), 96 * 1024 * 1024))


# ---------------- Pallas kernels ----------------

def _mlp_input_fused_kernel(x_ref, w1_ref, b1_ref, w2_ref, b2_ref, g_ref, be_ref,
                            w0_ref, hw0_ref):
    # h0 = LN( relu(x @ W1 + b1) @ W2 + b2 ) ; emit h0 @ W_layer0 directly (bf16).
    h = jnp.dot(x_ref[...], w1_ref[...], preferred_element_type=jnp.float32) + b1_ref[...]
    h = jnp.maximum(h, 0.0)
    z = jnp.dot(h.astype(jnp.bfloat16), w2_ref[...],
                preferred_element_type=jnp.float32) + b2_ref[...]
    z = _layernorm(z, g_ref[...], be_ref[...])
    hw0_ref[...] = jnp.dot(z.astype(jnp.bfloat16), w0_ref[...],
                           preferred_element_type=jnp.float32).astype(jnp.bfloat16)


def _feat_transform_kernel(h_ref, w_ref, o_ref):
    # Fallback pre-pass when there is no input layer: hW = h @ W  (bf16 out).
    o_ref[...] = jnp.dot(h_ref[...], w_ref[...],
                         preferred_element_type=jnp.float32).astype(jnp.bfloat16)


def _spmm_ln_kernel(apply_relu, fuse_next, resident_hw, tk, *refs):
    # acc[i] = sum_k A[i,k] @ hW[k]; finalize: +bias, LayerNorm, (ReLU),
    # store h in bf16 and (optionally) h @ W_next for the next layer.
    if fuse_next:
        a_ref, hw_ref, b_ref, g_ref, be_ref, wn_ref = refs[:6]
        h_ref, hwn_ref = refs[6:8]
        acc_ref = refs[8]
    else:
        a_ref, hw_ref, b_ref, g_ref, be_ref = refs[:5]
        h_ref = refs[5]
        acc_ref = refs[6]

    k = pl.program_id(1)

    @pl.when(k == 0)
    def _():
        acc_ref[...] = jnp.zeros_like(acc_ref)

    if resident_hw:
        start = pl.multiple_of(k * tk, tk)
        hw_blk = hw_ref[pl.ds(start, tk), :]
    else:
        hw_blk = hw_ref[...]

    acc_ref[...] += jnp.dot(a_ref[...], hw_blk, preferred_element_type=jnp.float32)

    @pl.when(k == pl.num_programs(1) - 1)
    def _():
        z = acc_ref[...] + b_ref[...]
        z = _layernorm(z, g_ref[...], be_ref[...])
        if apply_relu:
            z = jnp.maximum(z, 0.0)
        zb = z.astype(jnp.bfloat16)
        h_ref[...] = zb
        if fuse_next:
            hwn_ref[...] = jnp.dot(zb, wn_ref[...],
                                   preferred_element_type=jnp.float32).astype(jnp.bfloat16)


def _jk_output_kernel(n_layers, hidden, d_out, apply_softmax, *refs):
    # Fused JumpingKnowledge('cat') + Linear + LN (+softmax), lane-dense output:
    #   out = LN( sum_l h_l @ W_out[l*H:(l+1)*H, :] + b )
    # W/b/gamma/beta are zero-padded to d_pad lanes; stats use a mask over d_out.
    h_refs = refs[:n_layers]
    w_ref, b_ref, g_ref, be_ref, o_ref = refs[n_layers:]

    acc = None
    for l in range(n_layers):
        part = jnp.dot(h_refs[l][...], w_ref[l * hidden:(l + 1) * hidden, :],
                       preferred_element_type=jnp.float32)
        acc = part if acc is None else acc + part
    z = acc + b_ref[...]

    mask = jax.lax.broadcasted_iota(jnp.int32, z.shape, 1) < d_out
    mean = jnp.sum(jnp.where(mask, z, 0.0), axis=-1, keepdims=True) / d_out
    cz = jnp.where(mask, z - mean, 0.0)
    var = jnp.sum(cz * cz, axis=-1, keepdims=True) / d_out
    ln = (z - mean) * jax.lax.rsqrt(var + LN_EPS) * g_ref[...] + be_ref[...]

    if apply_softmax:
        neg_inf = jnp.full_like(ln, -jnp.inf)
        m = jnp.max(jnp.where(mask, ln, neg_inf), axis=-1, keepdims=True)
        e = jnp.where(mask, jnp.exp(ln - m), 0.0)
        ln = e / jnp.sum(e, axis=-1, keepdims=True)

    o_ref[...] = ln


# ---------------- pallas_call wrappers ----------------

def mlp_input_fused(x_bf16, w1, b1, w2, b2, gamma, beta, w0, *, tm):
    n, f_in = x_bf16.shape
    hidden = w0.shape[1]
    return pl.pallas_call(
        _mlp_input_fused_kernel,
        out_shape=jax.ShapeDtypeStruct((n, hidden), jnp.bfloat16),
        grid_spec=pltpu.PrefetchScalarGridSpec(
            num_scalar_prefetch=0,
            grid=(n // tm,),
            in_specs=[
                pl.BlockSpec((tm, f_in), lambda i: (i, 0)),
                pl.BlockSpec(w1.shape, lambda i: (0, 0)),
                pl.BlockSpec(b1.shape, lambda i: (0, 0)),
                pl.BlockSpec(w2.shape, lambda i: (0, 0)),
                pl.BlockSpec(b2.shape, lambda i: (0, 0)),
                pl.BlockSpec(gamma.shape, lambda i: (0, 0)),
                pl.BlockSpec(beta.shape, lambda i: (0, 0)),
                pl.BlockSpec(w0.shape, lambda i: (0, 0)),
            ],
            out_specs=pl.BlockSpec((tm, hidden), lambda i: (i, 0)),
        ),
        compiler_params=pltpu.CompilerParams(dimension_semantics=("parallel",)),
    )(x_bf16, w1, b1, w2, b2, gamma, beta, w0)


def feat_transform(h_bf16, w_bf16, *, tm):
    n, d_in = h_bf16.shape
    d_out = w_bf16.shape[1]
    return pl.pallas_call(
        _feat_transform_kernel,
        out_shape=jax.ShapeDtypeStruct((n, d_out), jnp.bfloat16),
        grid_spec=pltpu.PrefetchScalarGridSpec(
            num_scalar_prefetch=0,
            grid=(n // tm,),
            in_specs=[
                pl.BlockSpec((tm, d_in), lambda i: (i, 0)),
                pl.BlockSpec(w_bf16.shape, lambda i: (0, 0)),
            ],
            out_specs=pl.BlockSpec((tm, d_out), lambda i: (i, 0)),
        ),
        compiler_params=pltpu.CompilerParams(dimension_semantics=("parallel",)),
    )(h_bf16, w_bf16)


def spmm_ln(a_bf16, hw_bf16, b, gamma, beta, w_next_bf16, *, apply_relu, tm, tk):
    n = a_bf16.shape[0]
    d = hw_bf16.shape[1]
    fuse = w_next_bf16 is not None
    # Keep hW fully VMEM-resident when it fits; else stream per K tile (still bf16).
    resident = (n * d * 2) <= (16 * 1024 * 1024)
    grid = (n // tm, n // tk)

    in_specs = [
        pl.BlockSpec((tm, tk), lambda i, k: (i, k)),
        (pl.BlockSpec((n, d), lambda i, k: (0, 0)) if resident
         else pl.BlockSpec((tk, d), lambda i, k: (k, 0))),
        pl.BlockSpec(b.shape, lambda i, k: (0, 0)),
        pl.BlockSpec(gamma.shape, lambda i, k: (0, 0)),
        pl.BlockSpec(beta.shape, lambda i, k: (0, 0)),
    ]
    args = [a_bf16, hw_bf16, b, gamma, beta]
    if fuse:
        in_specs.append(pl.BlockSpec(w_next_bf16.shape, lambda i, k: (0, 0)))
        args.append(w_next_bf16)
        out_shape = (jax.ShapeDtypeStruct((n, d), jnp.bfloat16),
                     jax.ShapeDtypeStruct((n, d), jnp.bfloat16))
        out_specs = (pl.BlockSpec((tm, d), lambda i, k: (i, 0)),
                     pl.BlockSpec((tm, d), lambda i, k: (i, 0)))
    else:
        out_shape = jax.ShapeDtypeStruct((n, d), jnp.bfloat16)
        out_specs = pl.BlockSpec((tm, d), lambda i, k: (i, 0))

    vmem_est = (2 * tm * tk * 2
                + (2 * n * d * 2 if resident else 2 * tk * d * 2)
                + (2 if fuse else 1) * 2 * tm * d * 2
                + tm * d * 4
                + (2 * d * d * 2 if fuse else 0)
                + 8 * d * 4)
    cost = pl.CostEstimate(
        flops=2 * n * n * d + (2 * n * d * d if fuse else 0),
        transcendentals=n,
        bytes_accessed=(n * n * 2
                        + (n * d * 2 if resident else (n // tm) * n * d * 2)
                        + (2 if fuse else 1) * n * d * 2),
    )
    return pl.pallas_call(
        functools.partial(_spmm_ln_kernel, apply_relu, fuse, resident, tk),
        out_shape=out_shape,
        grid_spec=pltpu.PrefetchScalarGridSpec(
            num_scalar_prefetch=0,
            grid=grid,
            in_specs=in_specs,
            out_specs=out_specs,
            scratch_shapes=[pltpu.VMEM((tm, d), jnp.float32)],
        ),
        compiler_params=pltpu.CompilerParams(
            dimension_semantics=("parallel", "arbitrary"),
            vmem_limit_bytes=_vmem_limit(vmem_est)),
        cost_estimate=cost,
    )(*args)


def jk_output_layer(h_list, w, b, gamma, beta, *, apply_softmax, tm):
    n, hidden = h_list[0].shape
    d_out = w.shape[1]
    n_layers = len(h_list)
    d_pad = max(128, _round_up(d_out, 128))
    # Zero-pad output params to a lane-dense width; LN/softmax are masked in-kernel.
    w_p = jnp.pad(w, ((0, 0), (0, d_pad - d_out))).astype(jnp.bfloat16)
    b_p = jnp.pad(b, ((0, 0), (0, d_pad - d_out)))
    g_p = jnp.pad(gamma, ((0, 0), (0, d_pad - d_out)))
    be_p = jnp.pad(beta, ((0, 0), (0, d_pad - d_out)))

    kern = functools.partial(_jk_output_kernel, n_layers, hidden, d_out, apply_softmax)
    h_specs = [pl.BlockSpec((tm, hidden), lambda i: (i, 0)) for _ in h_list]
    out = pl.pallas_call(
        kern,
        out_shape=jax.ShapeDtypeStruct((n, d_pad), jnp.float32),
        grid_spec=pltpu.PrefetchScalarGridSpec(
            num_scalar_prefetch=0,
            grid=(n // tm,),
            in_specs=h_specs + [
                pl.BlockSpec(w_p.shape, lambda i: (0, 0)),
                pl.BlockSpec(b_p.shape, lambda i: (0, 0)),
                pl.BlockSpec(g_p.shape, lambda i: (0, 0)),
                pl.BlockSpec(be_p.shape, lambda i: (0, 0)),
            ],
            out_specs=pl.BlockSpec((tm, d_pad), lambda i: (i, 0)),
        ),
        compiler_params=pltpu.CompilerParams(dimension_semantics=("parallel",)),
    )(*h_list, w_p, b_p, g_p, be_p)
    return out[:, :d_out]


# ---------------- tiling plan & graph prep (hoisted out of forward) ----------------

def plan_tiles(n, *, tile_m=512, tile_k=512):
    n_min = _round_up(n, 128)
    tm = min(_round_up(tile_m, 128), n_min)
    if n_min >= 256:  # keep >=2 row tiles so v7x's second TensorCore is used
        tm = min(tm, max(128, (n_min // 2) // 128 * 128))
    tk = min(_round_up(tile_k, 128), n_min)
    step = (tm * tk) // math.gcd(tm, tk)
    n_pad = _round_up(n, step)
    return tm, tk, n_pad


def prepare_adjacency(a_norm, n_pad):
    # Cast to bf16 BEFORE padding (halves the one-off XLA traffic); do this once
    # per graph and reuse across forward passes.
    a = a_norm.astype(jnp.bfloat16)
    pad = n_pad - a.shape[0]
    if pad:
        a = jnp.pad(a, ((0, pad), (0, pad)))
    return a


# ---------------- JKNet forward (glue in plain JAX) ----------------

def jknet_forward(params, a_bf16_padded, x, *, n_layers, use_input_layer=True,
                  softmax_output=False, tm=128, tk=128):
    n = x.shape[0]
    n_pad = a_bf16_padded.shape[0]
    pad = n_pad - n

    x_b = x.astype(jnp.bfloat16)
    if pad:
        x_b = jnp.pad(x_b, ((0, pad), (0, 0)))

    w0_bf16 = params["layers"][0][0].astype(jnp.bfloat16)
    if use_input_layer:
        w1, b1, w2, b2, g_in, be_in = params["input_layer"]
        hw = mlp_input_fused(x_b, w1.astype(jnp.bfloat16), b1,
                             w2.astype(jnp.bfloat16), b2, g_in, be_in,
                             w0_bf16, tm=tm)
    else:
        hw = feat_transform(x_b, w0_bf16, tm=tm)

    h_list = []
    for i in range(n_layers):
        _, b, g, be = params["layers"][i]
        fuse = i < n_layers - 1
        apply_relu = i < n_layers - 1  # last RGCN layer: activation=False
        w_next = params["layers"][i + 1][0].astype(jnp.bfloat16) if fuse else None
        res = spmm_ln(a_bf16_padded, hw, b, g, be, w_next,
                      apply_relu=apply_relu, tm=tm, tk=tk)
        if fuse:
            h, hw = res
        else:
            h = res
        h_list.append(h)

    out = jk_output_layer(h_list, *params["output_layer"],
                          apply_softmax=softmax_output, tm=tm)
    return out[:n]


# ---------------- deterministic param / graph construction ----------------

def _linear_params(key, d_in, d_out, scale=0.1):
    kw, kb = jax.random.split(key)
    w = scale * jax.random.normal(kw, (d_in, d_out), jnp.float32)
    b = scale * jax.random.normal(kb, (1, d_out), jnp.float32)
    return w, b


def _ln_params(d):
    return jnp.ones((1, d), jnp.float32), jnp.zeros((1, d), jnp.float32)


def make_params(key, f_in, hidden, out, n_layers):
    keys = jax.random.split(key, 3 + n_layers)
    w1, b1 = _linear_params(keys[0], f_in, f_in)
    w2, b2 = _linear_params(keys[1], f_in, f_in)
    g_in, be_in = _ln_params(f_in)
    layers = []
    d_prev = f_in
    for i in range(n_layers):
        w, b = _linear_params(keys[2 + i], d_prev, hidden)
        g, be = _ln_params(hidden)
        layers.append((w, b, g, be))
        d_prev = hidden
    wo, bo = _linear_params(keys[2 + n_layers], hidden * n_layers, out)
    g_o, be_o = _ln_params(out)
    return {
        "input_layer": (w1, b1, w2, b2, g_in, be_in),
        "layers": layers,
        "output_layer": (wo, bo, g_o, be_o),
    }


def make_normalized_adjacency(key, n):
    k1, k2 = jax.random.split(key)
    adj = (jax.random.uniform(k1, (n, n)) < 0.4).astype(jnp.float32)
    adj = jnp.maximum(adj, jnp.eye(n, dtype=jnp.float32))
    edge_w = jax.random.uniform(k2, (n, n), jnp.float32, 0.5, 1.5) * adj
    d_in = jnp.clip(jnp.sum(adj, axis=1, keepdims=True), 1.0, None)
    d_out = jnp.clip(jnp.sum(adj, axis=0, keepdims=True), 1.0, None)
    return edge_w * jax.lax.rsqrt(d_in) * jax.lax.rsqrt(d_out)


if __name__ == "__main__":
    N, F_IN, HIDDEN, OUT, N_LAYERS = 256, 128, 128, 8, 3

    key = jax.random.PRNGKey(0)
    k_x, k_g, k_p = jax.random.split(key, 3)

    x = jax.random.normal(k_x, (N, F_IN), jnp.float32)
    a_norm = make_normalized_adjacency(k_g, N)
    params = make_params(k_p, F_IN, HIDDEN, OUT, N_LAYERS)

    tm, tk, n_pad = plan_tiles(N, tile_m=512, tile_k=512)
    a_bf16 = jax.block_until_ready(prepare_adjacency(a_norm, n_pad))  # once per graph

    out = jknet_forward(params, a_bf16, x, n_layers=N_LAYERS,
                        use_input_layer=True, softmax_output=False, tm=tm, tk=tk)
    out = jax.block_until_ready(out)
    assert out.shape == (N, OUT) and out.dtype == jnp.float32
    assert bool(jnp.all(jnp.isfinite(out)))
    print("KERNEL_OK")
</pallas_src>

<mosaic_0001>
module attributes {stable_mosaic.version = 11 : i64} {
  func.func @_mlp_input_fused_kernel(%arg0: i32, %arg1: memref<128x128xbf16, #tpu.memory_space<vmem>>, %arg2: memref<128x128xbf16, #tpu.memory_space<vmem>>, %arg3: memref<1x128xf32, #tpu.memory_space<vmem>>, %arg4: memref<128x128xbf16, #tpu.memory_space<vmem>>, %arg5: memref<1x128xf32, #tpu.memory_space<vmem>>, %arg6: memref<1x128xf32, #tpu.memory_space<vmem>>, %arg7: memref<1x128xf32, #tpu.memory_space<vmem>>, %arg8: memref<128x128xbf16, #tpu.memory_space<vmem>>, %arg9: memref<128x128xbf16, #tpu.memory_space<vmem>>) attributes {dimension_semantics = [#tpu.dimension_semantics<parallel>], iteration_bounds = array<i64: 2>, scalar_prefetch = 0 : i64, scratch_operands = 0 : i64, tpu.core_type = #tpu.core_type<tc>, window_params = [{transform_indices = @transform_0, window_bounds = array<i64: 128, 128>}, {pipeline_mode = #tpu.pipeline_mode<synchronous>, transform_indices = @transform_1, window_bounds = array<i64: 128, 128>}, {pipeline_mode = #tpu.pipeline_mode<synchronous>, transform_indices = @transform_2, window_bounds = array<i64: 1, 128>}, {pipeline_mode = #tpu.pipeline_mode<synchronous>, transform_indices = @transform_3, window_bounds = array<i64: 128, 128>}, {pipeline_mode = #tpu.pipeline_mode<synchronous>, transform_indices = @transform_4, window_bounds = array<i64: 1, 128>}, {pipeline_mode = #tpu.pipeline_mode<synchronous>, transform_indices = @transform_5, window_bounds = array<i64: 1, 128>}, {pipeline_mode = #tpu.pipeline_mode<synchronous>, transform_indices = @transform_6, window_bounds = array<i64: 1, 128>}, {pipeline_mode = #tpu.pipeline_mode<synchronous>, transform_indices = @transform_7, window_bounds = array<i64: 128, 128>}, {transform_indices = @transform_8, window_bounds = array<i64: 128, 128>}]} {
    %c0 = arith.constant 0 : index
    %c0_0 = arith.constant 0 : index
    %0 = vector.load %arg1[%c0, %c0_0] : memref<128x128xbf16, #tpu.memory_space<vmem>>, vector<128x128xbf16>
    %c0_1 = arith.constant 0 : index
    %c0_2 = arith.constant 0 : index
    %1 = vector.load %arg2[%c0_1, %c0_2] : memref<128x128xbf16, #tpu.memory_space<vmem>>, vector<128x128xbf16>
    %cst = arith.constant dense<0.000000e+00> : vector<128x128xf32>
    %2 = tpu.matmul %0, %1, %cst {dimension_numbers = #tpu.dot_dimension_numbers<[1], [0], [0], [1], [0, 0, 1, 1], [], []>} : vector<128x128xbf16>, vector<128x128xbf16>, vector<128x128xf32> -> vector<128x128xf32>
    %c0_3 = arith.constant 0 : index
    %c0_4 = arith.constant 0 : index
    %3 = vector.load %arg3[%c0_3, %c0_4] : memref<1x128xf32, #tpu.memory_space<vmem>>, vector<1x128xf32>
    %4 = vector.broadcast %3 : vector<1x128xf32> to vector<128x128xf32>
    %5 = arith.addf %2, %4 : vector<128x128xf32>
    %cst_5 = arith.constant 0.000000e+00 : f32
    %6 = vector.broadcast %cst_5 : f32 to vector<128x128xf32>
    %7 = arith.maximumf %5, %6 : vector<128x128xf32>
    %8 = arith.truncf %7 : vector<128x128xf32> to vector<128x128xbf16>
    %c0_6 = arith.constant 0 : index
    %c0_7 = arith.constant 0 : index
    %9 = vector.load %arg4[%c0_6, %c0_7] : memref<128x128xbf16, #tpu.memory_space<vmem>>, vector<128x128xbf16>
    %cst_8 = arith.constant dense<0.000000e+00> : vector<128x128xf32>
    %10 = tpu.matmul %8, %9, %cst_8 {dimension_numbers = #tpu.dot_dimension_numbers<[1], [0], [0], [1], [0, 0, 1, 1], [], []>} : vector<128x128xbf16>, vector<128x128xbf16>, vector<128x128xf32> -> vector<128x128xf32>
    %c0_9 = arith.constant 0 : index
    %c0_10 = arith.constant 0 : index
    %11 = vector.load %arg5[%c0_9, %c0_10] : memref<1x128xf32, #tpu.memory_space<vmem>>, vector<1x128xf32>
    %12 = vector.broadcast %11 : vector<1x128xf32> to vector<128x128xf32>
    %13 = arith.addf %10, %12 : vector<128x128xf32>
    %c0_11 = arith.constant 0 : index
    %c0_12 = arith.constant 0 : index
    %14 = vector.load %arg6[%c0_11, %c0_12] : memref<1x128xf32, #tpu.memory_space<vmem>>, vector<1x128xf32>
    %c0_13 = arith.constant 0 : index
    %c0_14 = arith.constant 0 : index
    %15 = vector.load %arg7[%c0_13, %c0_14] : memref<1x128xf32, #tpu.memory_space<vmem>>, vector<1x128xf32>
    %cst_15 = arith.constant dense<0.000000e+00> : vector<128xf32>
    %16 = vector.multi_reduction <add>, %13, %cst_15 [1] : vector<128x128xf32> to vector<128xf32>
    %17 = vector.shape_cast %16 : vector<128xf32> to vector<128x1xf32>
    %cst_16 = arith.constant 1.280000e+02 : f32
    %18 = vector.broadcast %cst_16 : f32 to vector<128x1xf32>
    %19 = arith.divf %17, %18 : vector<128x1xf32>
    %20 = vector.broadcast %19 : vector<128x1xf32> to vector<128x128xf32>
    %21 = arith.subf %13, %20 : vector<128x128xf32>
    %22 = arith.mulf %21, %21 : vector<128x128xf32>
    %cst_17 = arith.constant dense<0.000000e+00> : vector<128xf32>
    %23 = vector.multi_reduction <add>, %22, %cst_17 [1] : vector<128x128xf32> to vector<128xf32>
    %24 = vector.shape_cast %23 : vector<128xf32> to vector<128x1xf32>
    %cst_18 = arith.constant 1.280000e+02 : f32
    %25 = vector.broadcast %cst_18 : f32 to vector<128x1xf32>
    %26 = arith.divf %24, %25 : vector<128x1xf32>
    %27 = vector.broadcast %19 : vector<128x1xf32> to vector<128x128xf32>
    %28 = arith.subf %13, %27 : vector<128x128xf32>
    %cst_19 = arith.constant 9.99999974E-6 : f32
    %29 = vector.broadcast %cst_19 : f32 to vector<128x1xf32>
    %30 = arith.addf %26, %29 : vector<128x1xf32>
    %31 = math.rsqrt %30 : vector<128x1xf32>
    %32 = vector.broadcast %31 : vector<128x1xf32> to vector<128x128xf32>
    %33 = arith.mulf %28, %32 : vector<128x128xf32>
    %34 = vector.broadcast %14 : vector<1x128xf32> to vector<128x128xf32>
    %35 = arith.mulf %33, %34 : vector<128x128xf32>
    %36 = vector.broadcast %15 : vector<1x128xf32> to vector<128x128xf32>
    %37 = arith.addf %35, %36 : vector<128x128xf32>
    %38 = arith.truncf %37 : vector<128x128xf32> to vector<128x128xbf16>
    %c0_20 = arith.constant 0 : index
    %c0_21 = arith.constant 0 : index
    %39 = vector.load %arg8[%c0_20, %c0_21] : memref<128x128xbf16, #tpu.memory_space<vmem>>, vector<128x128xbf16>
    %cst_22 = arith.constant dense<0.000000e+00> : vector<128x128xf32>
    %40 = tpu.matmul %38, %39, %cst_22 {dimension_numbers = #tpu.dot_dimension_numbers<[1], [0], [0], [1], [0, 0, 1, 1], [], []>} : vector<128x128xbf16>, vector<128x128xbf16>, vector<128x128xf32> -> vector<128x128xf32>
    %41 = arith.truncf %40 : vector<128x128xf32> to vector<128x128xbf16>
    %c0_23 = arith.constant 0 : index
    %c0_24 = arith.constant 0 : index
    %42 = vector.load %arg9[%c0_23, %c0_24] : memref<128x128xbf16, #tpu.memory_space<vmem>>, vector<128x128xbf16>
    tpu.vector_store %arg9[%c0_23, %c0_24], %41 {strides = array<i32>} : memref<128x128xbf16, #tpu.memory_space<vmem>>, vector<128x128xbf16>,
    return
  }
  func.func @transform_0(%arg0: i32) -> (i32, i32) {
    %c0_i32 = arith.constant 0 : i32
    %c0_i32_0 = arith.constant 0 : i32
    return %arg0, %c0_i32 : i32, i32
  }
  func.func @transform_1(%arg0: i32) -> (i32, i32) {
    %c0_i32 = arith.constant 0 : i32
    %c0_i32_0 = arith.constant 0 : i32
    %c0_i32_1 = arith.constant 0 : i32
    return %c0_i32, %c0_i32_0 : i32, i32
  }
  func.func @transform_2(%arg0: i32) -> (i32, i32) {
    %c0_i32 = arith.constant 0 : i32
    %c0_i32_0 = arith.constant 0 : i32
    %c0_i32_1 = arith.constant 0 : i32
    return %c0_i32, %c0_i32_0 : i32, i32
  }
  func.func @transform_3(%arg0: i32) -> (i32, i32) {
    %c0_i32 = arith.constant 0 : i32
    %c0_i32_0 = arith.constant 0 : i32
    %c0_i32_1 = arith.constant 0 : i32
    return %c0_i32, %c0_i32_0 : i32, i32
  }
  func.func @transform_4(%arg0: i32) -> (i32, i32) {
    %c0_i32 = arith.constant 0 : i32
    %c0_i32_0 = arith.constant 0 : i32
    %c0_i32_1 = arith.constant 0 : i32
    return %c0_i32, %c0_i32_0 : i32, i32
  }
  func.func @transform_5(%arg0: i32) -> (i32, i32) {
    %c0_i32 = arith.constant 0 : i32
    %c0_i32_0 = arith.constant 0 : i32
    %c0_i32_1 = arith.constant 0 : i32
    return %c0_i32, %c0_i32_0 : i32, i32
  }
  func.func @transform_6(%arg0: i32) -> (i32, i32) {
    %c0_i32 = arith.constant 0 : i32
    %c0_i32_0 = arith.constant 0 : i32
    %c0_i32_1 = arith.constant 0 : i32
    return %c0_i32, %c0_i32_0 : i32, i32
  }
  func.func @transform_7(%arg0: i32) -> (i32, i32) {
    %c0_i32 = arith.constant 0 : i32
    %c0_i32_0 = arith.constant 0 : i32
    %c0_i32_1 = arith.constant 0 : i32
    return %c0_i32, %c0_i32_0 : i32, i32
  }
  func.func @transform_8(%arg0: i32) -> (i32, i32) {
    %c0_i32 = arith.constant 0 : i32
    %c0_i32_0 = arith.constant 0 : i32
    return %arg0, %c0_i32 : i32, i32
  }
}

</mosaic_0001>

<llo_original>
// kernel: tpu_custom_call.1
$region0: #{tpu_custom_call.1}
  #allocation0 [shape = 'u32[]', space=smem, size = 0x4, offset = 0x4, fixed_abs, tag = 'smem constant byte address 0x4 - core index']
  #allocation1 [shape = 'u32[144,128]{1,0:T(1,128)}', space=vmem, size = 0x12000, scoped, tag = 'internal scratch']
  %s0 = inlined_call_operand.hbm [shape: bf16[256,128], index: 0, kind: input, shape index: {}]
  %s1 = inlined_call_operand.hbm [shape: bf16[128,128], index: 1, kind: input, shape index: {}]
  %s2 = inlined_call_operand.vmem [shape: f32[1,128], index: 2, kind: input, shape index: {}]
  %s3 = inlined_call_operand.hbm [shape: bf16[128,128], index: 3, kind: input, shape index: {}]
  %s4 = inlined_call_operand.vmem [shape: f32[1,128], index: 4, kind: input, shape index: {}]
  %s5 = inlined_call_operand.vmem [shape: f32[1,128], index: 5, kind: input, shape index: {}]
  %s6 = inlined_call_operand.vmem [shape: f32[1,128], index: 6, kind: input, shape index: {}]
  %s7 = inlined_call_operand.hbm [shape: bf16[128,128], index: 7, kind: input, shape index: {}]
  %s8 = inlined_call_operand.hbm [shape: bf16[256,128], index: 8, kind: output, shape index: {}]
  %s9 = sld [smem:[#allocation0]]
  $region81: #{tpu_custom_call.1} parent=0
    _
  %s11 = ssub.s32 1, %s9
  %s12 = scalar_select 0, %s11, %s9
  $region1: #{tpu_custom_call.1} parent=0
    #allocation2 [shape = 'u8[65536]{0}', space=vmem, size = 0x10000, scoped, tag = 'input window, operand 0']
    #allocation3 [shape = 's32[2]{0}', space=sflag, size = 0x8, scoped, tag = 'scoped memory for tpu_custom_call.1']
    #allocation4 [shape = 's32[2]{0}', space=sflag, size = 0x8, scoped, tag = 'scoped memory for tpu_custom_call.1']
    #allocation5 [shape = 'u8[32768]{0}', space=vmem, size = 0x8000, scoped, tag = 'input window, operand 1, single buffered']
    #allocation6 [shape = 's32[1]{0}', space=sflag, size = 0x4, scoped, tag = 'scoped memory for tpu_custom_call.1']
    #allocation7 [shape = 'u8[32768]{0}', space=vmem, size = 0x8000, scoped, tag = 'input window, operand 3, single buffered']
    #allocation8 [shape = 'u8[32768]{0}', space=vmem, size = 0x8000, scoped, tag = 'input window, operand 7, single buffered']
    #allocation9 [shape = 's32[1]{0}', space=sflag, size = 0x4, scoped, tag = 'scoped memory for tpu_custom_call.1']
    #allocation10 [shape = 'u8[65536]{0}', space=vmem, size = 0x10000, scoped, tag = 'output window, operand 0']
    %13 = vsyncpa [#allocation3], 0
    %s14 = scalar_lea.sflag [#allocation3], 1
    %15 = vsyncpa %s14, 0
    %16 = vsyncpa [#allocation6], 0
    %17 = vsyncpa [#allocation9], 0
    %18 = vsyncpa [#allocation4], 0
    %s19 = scalar_lea.sflag [#allocation4], 1
    %20 = vsyncpa %s19, 0
    loop: start=0, step=1, limit=4
    $region2: #{tpu_custom_call.1} parent=1 // loop_pre_header
      _
    $region3: #{tpu_custom_call.1} parent=1 // loop_header
      %s22 = sphi 0, %s26
      %p23 = scmp.ge.s32.totalorder %s22, 4
      %s32 = sphi 0, %s34
      %s35 = sphi 0, %s32
      %s36 = sphi 0, %s35
      %s52 = sphi 0, %s36
      %s56 = sphi 0, %s56
      %s58 = sphi 0, %s56
      %s59 = sphi 0, %s58
      %s73 = sphi 0, %s59
      %s77 = sphi 0, %s77
      %s79 = sphi 0, %s77
      %s80 = sphi 0, %s79
      %s94 = sphi 0, %s80
      %s98 = sphi 0, %s98
      %s100 = sphi 0, %s98
      %s101 = sphi 0, %s100
      %s115 = sphi 0, %s101
      %s119 = sphi 0, %s119
      %s121 = sphi 0, %s119
      %s122 = sphi 0, %s121
      %s136 = sphi 0, %s122
      %s140 = sphi 0, %s140
      %s142 = sphi 0, %s140
      %s143 = sphi 0, %s142
      %s157 = sphi 0, %s143
      %s161 = sphi 0, %s161
      %s163 = sphi 0, %s161
      %s164 = sphi 0, %s163
      %s178 = sphi 0, %s164
      %s182 = sphi 0, %s182
      %s184 = sphi 0, %s182
      %s185 = sphi 0, %s184
      %s199 = sphi 0, %s185
      %s205 = sphi 0, %s207
      %s208 = sphi 0, %s205
      %s209 = sphi 0, %s208
      %s225 = sphi 0, %s209
    $region4: #{tpu_custom_call.1} parent=1 // loop_header_branch
      %25 = sbr.rel (%p23) target = $region8
    $region5: #{tpu_custom_call.1} parent=1 // loop_body
      %s27 = ssub.s32 %s22, 1
      %s28 = ssub.s32 %s22, 2
      %s29 = sadd.s32 %s22, 1
      %s30 = ssub.s32 %s22, %s29
      %p31 = scmp.eq.s32.totalorder %s30, 0
      %s33 = sadd.s32 %s32, 1
      %s34 = scalar_select %p31, %s32, %s33
      %p37 = pneg %p31
      %p38 = scmp.eq.s32.totalorder %s22, 1
      %p39 = por %p37, %p38
      %p40 = scmp.ne.s32.totalorder %s32, %s35
      %p41 = scmp.eq.s32.totalorder %s22, 0
      %p42 = por %p40, %p41
      %p43 = scmp.ne.s32.totalorder %s32, %s35
      %p44 = scmp.eq.s32.totalorder %s27, 1
      %p45 = por %p43, %p44
      %p46 = scmp.ne.s32.totalorder %s35, %s36
      %p47 = scmp.eq.s32.totalorder %s27, 0
      %p48 = por %p46, %p47
      %p49 = scmp.ne.s32.totalorder %s35, %s36
      %p50 = scmp.eq.s32.totalorder %s28, 1
      %p51 = por %p49, %p50
      %p53 = scmp.ne.s32.totalorder %s36, %s52
      %p54 = scmp.eq.s32.totalorder %s28, 0
      %p55 = por %p53, %p54
      %s57 = sadd.s32 %s56, 1
      %p60 = scmp.eq.s32.totalorder %s22, 1
      %p61 = scmp.ne.s32.totalorder %s56, %s58
      %p62 = scmp.eq.s32.totalorder %s22, 0
      %p63 = por %p61, %p62
      %p64 = scmp.ne.s32.totalorder %s56, %s58
      %p65 = scmp.eq.s32.totalorder %s27, 1
      %p66 = por %p64, %p65
      %p67 = scmp.ne.s32.totalorder %s58, %s59
      %p68 = scmp.eq.s32.totalorder %s27, 0
      %p69 = por %p67, %p68
      %p70 = scmp.ne.s32.totalorder %s58, %s59
      %p71 = scmp.eq.s32.totalorder %s28, 1
      %p72 = por %p70, %p71
      %p74 = scmp.ne.s32.totalorder %s59, %s73
      %p75 = scmp.eq.s32.totalorder %s28, 0
      %p76 = por %p74, %p75
      %s78 = sadd.s32 %s77, 1
      %p81 = scmp.eq.s32.totalorder %s22, 1
      %p82 = scmp.ne.s32.totalorder %s77, %s79
      %p83 = scmp.eq.s32.totalorder %s22, 0
      %p84 = por %p82, %p83
      %p85 = scmp.ne.s32.totalorder %s77, %s79
      %p86 = scmp.eq.s32.totalorder %s27, 1
      %p87 = por %p85, %p86
      %p88 = scmp.ne.s32.totalorder %s79, %s80
      %p89 = scmp.eq.s32.totalorder %s27, 0
      %p90 = por %p88, %p89
      %p91 = scmp.ne.s32.totalorder %s79, %s80
      %p92 = scmp.eq.s32.totalorder %s28, 1
      %p93 = por %p91, %p92
      %p95 = scmp.ne.s32.totalorder %s80, %s94
      %p96 = scmp.eq.s32.totalorder %s28, 0
      %p97 = por %p95, %p96
      %s99 = sadd.s32 %s98, 1
      %p102 = scmp.eq.s32.totalorder %s22, 1
      %p103 = scmp.ne.s32.totalorder %s98, %s100
      %p104 = scmp.eq.s32.totalorder %s22, 0
      %p105 = por %p103, %p104
      %p106 = scmp.ne.s32.totalorder %s98, %s100
      %p107 = scmp.eq.s32.totalorder %s27, 1
      %p108 = por %p106, %p107
      %p109 = scmp.ne.s32.totalorder %s100, %s101
      %p110 = scmp.eq.s32.totalorder %s27, 0
      %p111 = por %p109, %p110
      %p112 = scmp.ne.s32.totalorder %s100, %s101
      %p113 = scmp.eq.s32.totalorder %s28, 1
      %p114 = por %p112, %p113
      %p116 = scmp.ne.s32.totalorder %s101, %s115
      %p117 = scmp.eq.s32.totalorder %s28, 0
      %p118 = por %p116, %p117
      %s120 = sadd.s32 %s119, 1
      %p123 = scmp.eq.s32.totalorder %s22, 1
      %p124 = scmp.ne.s32.totalorder %s119, %s121
      %p125 = scmp.eq.s32.totalorder %s22, 0
      %p126 = por %p124, %p125
      %p127 = scmp.ne.s32.totalorder %s119, %s121
      %p128 = scmp.eq.s32.totalorder %s27, 1
      %p129 = por %p127, %p128
      %p130 = scmp.ne.s32.totalorder %s121, %s122
      %p131 = scmp.eq.s32.totalorder %s27, 0
      %p132 = por %p130, %p131
      %p133 = scmp.ne.s32.totalorder %s121, %s122
      %p134 = scmp.eq.s32.totalorder %s28, 1
      %p135 = por %p133, %p134
      %p137 = scmp.ne.s32.totalorder %s122, %s136
      %p138 = scmp.eq.s32.totalorder %s28, 0
      %p139 = por %p137, %p138
      %s141 = sadd.s32 %s140, 1
      %p144 = scmp.eq.s32.totalorder %s22, 1
      %p145 = scmp.ne.s32.totalorder %s140, %s142
      %p146 = scmp.eq.s32.totalorder %s22, 0
      %p147 = por %p145, %p146
      %p148 = scmp.ne.s32.totalorder %s140, %s142
      %p149 = scmp.eq.s32.totalorder %s27, 1
      %p150 = por %p148, %p149
      %p151 = scmp.ne.s32.totalorder %s142, %s143
      %p152 = scmp.eq.s32.totalorder %s27, 0
      %p153 = por %p151, %p152
      %p154 = scmp.ne.s32.totalorder %s142, %s143
      %p155 = scmp.eq.s32.totalorder %s28, 1
      %p156 = por %p154, %p155
      %p158 = scmp.ne.s32.totalorder %s143, %s157
      %p159 = scmp.eq.s32.totalorder %s28, 0
      %p160 = por %p158, %p159
      %s162 = sadd.s32 %s161, 1
      %p165 = scmp.eq.s32.totalorder %s22, 1
      %p166 = scmp.ne.s32.totalorder %s161, %s163
      %p167 = scmp.eq.s32.totalorder %s22, 0
      %p168 = por %p166, %p167
      %p169 = scmp.ne.s32.totalorder %s161, %s163
      %p170 = scmp.eq.s32.totalorder %s27, 1
      %p171 = por %p169, %p170
      %p172 = scmp.ne.s32.totalorder %s163, %s164
      %p173 = scmp.eq.s32.totalorder %s27, 0
      %p174 = por %p172, %p173
      %p175 = scmp.ne.s32.totalorder %s163, %s164
      %p176 = scmp.eq.s32.totalorder %s28, 1
      %p177 = por %p175, %p176
      %p179 = scmp.ne.s32.totalorder %s164, %s178
      %p180 = scmp.eq.s32.totalorder %s28, 0
      %p181 = por %p179, %p180
      %s183 = sadd.s32 %s182, 1
      %p186 = scmp.eq.s32.totalorder %s22, 1
      %p187 = scmp.ne.s32.totalorder %s182, %s184
      %p188 = scmp.eq.s32.totalorder %s22, 0
      %p189 = por %p187, %p188
      %p190 = scmp.ne.s32.totalorder %s182, %s184
      %p191 = scmp.eq.s32.totalorder %s27, 1
      %p192 = por %p190, %p191
      %p193 = scmp.ne.s32.totalorder %s184, %s185
      %p194 = scmp.eq.s32.totalorder %s27, 0
      %p195 = por %p193, %p194
      %p196 = scmp.ne.s32.totalorder %s184, %s185
      %p197 = scmp.eq.s32.totalorder %s28, 1
      %p198 = por %p196, %p197
      %p200 = scmp.ne.s32.totalorder %s185, %s199
      %p201 = scmp.eq.s32.totalorder %s28, 0
      %p202 = por %p200, %p201
      %s203 = ssub.s32 %s22, %s29
      %p204 = scmp.eq.s32.totalorder %s203, 0
      %s206 = sadd.s32 %s205, 1
      %s207 = scalar_select %p204, %s205, %s206
      %p210 = pneg %p204
      %p211 = scmp.eq.s32.totalorder %s22, 1
      %p212 = por %p210, %p211
      %p213 = scmp.ne.s32.totalorder %s205, %s208
      %p214 = scmp.eq.s32.totalorder %s22, 0
      %p215 = por %p213, %p214
      %p216 = scmp.ne.s32.totalorder %s205, %s208
      %p217 = scmp.eq.s32.totalorder %s27, 1
      %p218 = por %p216, %p217
      %p219 = scmp.ne.s32.totalorder %s208, %s209
      %p220 = scmp.eq.s32.totalorder %s27, 0
      %p221 = por %p219, %p220
      %p222 = scmp.ne.s32.totalorder %s208, %s209
      %p223 = scmp.eq.s32.totalorder %s28, 1
      %p224 = por %p222, %p223
      %p226 = scmp.ne.s32.totalorder %s209, %s225
      %p227 = scmp.eq.s32.totalorder %s28, 0
      %p228 = por %p226, %p227
      %p229 = scmp.le.s32.totalorder 1, %s22
      %p230 = scmp.lt.s32.totalorder %s22, 3
      %p231 = pnand %p229, %p230
      %p232 = pneg %p231
      // Predicated region
      $region9: #{tpu_custom_call.1} parent=5 // pred_check
        _
      $region10: #{tpu_custom_call.1} parent=5 // pred_check_branch
        %234 = sbr.rel (%p231) target = $region12
      $region11: #{tpu_custom_call.1} parent=5 // pred_region
        %s235 = ssub.s32 %s22, 1
        // Predicated region
        $region13: #{tpu_custom_call.1} parent=11 // pred_check
          %p236 = pneg %p69
        $region14: #{tpu_custom_call.1} parent=11 // pred_check_branch
          %238 = sbr.rel (%p236) target = $region16
        $region15: #{tpu_custom_call.1} parent=11 // pred_region
          %s240 = ssub.s32 1024, 1024
          %241 = vsyncadd [#allocation6], %s240
          %s242 = sshll.u32 [#allocation5], 4
          %s243 = int_to_ptr.vmem [resolvable:$true] %s242
          %248 = dma.hbm_to_vmem [thread:$0]  %s1, 1024, %s243, [#allocation6], 64, 64, 4
        $region16: #{tpu_custom_call.1} parent=11 // pred_fallthru
          _
        // Predicated region
        $region17: #{tpu_custom_call.1} parent=11 // pred_check
          %p249 = pneg %p90
        $region18: #{tpu_custom_call.1} parent=11 // pred_check_branch
          %251 = sbr.rel (%p249) target = $region20
        $region19: #{tpu_custom_call.1} parent=11 // pred_region
          _
        $region20: #{tpu_custom_call.1} parent=11 // pred_fallthru
          _
        // Predicated region
        $region21: #{tpu_custom_call.1} parent=11 // pred_check
          %p252 = pneg %p111
        $region22: #{tpu_custom_call.1} parent=11 // pred_check_branch
          %254 = sbr.rel (%p252) target = $region24
        $region23: #{tpu_custom_call.1} parent=11 // pred_region
          %s256 = ssub.s32 1024, 1024
          %257 = vsyncadd [#allocation6], %s256
          %s258 = sshll.u32 [#allocation7], 4
          %s259 = int_to_ptr.vmem [resolvable:$true] %s258
          %264 = dma.hbm_to_vmem [thread:$0]  %s3, 1024, %s259, [#allocation6], 64, 64, 4
        $region24: #{tpu_custom_call.1} parent=11 // pred_fallthru
          _
        // Predicated region
        $region25: #{tpu_custom_call.1} parent=11 // pred_check
          %p265 = pneg %p132
        $region26: #{tpu_custom_call.1} parent=11 // pred_check_branch
          %267 = sbr.rel (%p265) target = $region28
        $region27: #{tpu_custom_call.1} parent=11 // pred_region
          _
        $region28: #{tpu_custom_call.1} parent=11 // pred_fallthru
          _
        // Predicated region
        $region29: #{tpu_custom_call.1} parent=11 // pred_check
          %p268 = pneg %p153
        $region30: #{tpu_custom_call.1} parent=11 // pred_check_branch
          %270 = sbr.rel (%p268) target = $region32
        $region31: #{tpu_custom_call.1} parent=11 // pred_region
          _
        $region32: #{tpu_custom_call.1} parent=11 // pred_fallthru
          _
        // Predicated region
        $region33: #{tpu_custom_call.1} parent=11 // pred_check
          %p271 = pneg %p174
        $region34: #{tpu_custom_call.1} parent=11 // pred_check_branch
          %273 = sbr.rel (%p271) target = $region36
        $region35: #{tpu_custom_call.1} parent=11 // pred_region
          _
        $region36: #{tpu_custom_call.1} parent=11 // pred_fallthru
          _
        // Predicated region
        $region37: #{tpu_custom_call.1} parent=11 // pred_check
          %p274 = pneg %p195
        $region38: #{tpu_custom_call.1} parent=11 // pred_check_branch
          %276 = sbr.rel (%p274) target = $region40
        $region39: #{tpu_custom_call.1} parent=11 // pred_region
          %s278 = ssub.s32 1024, 1024
          %279 = vsyncadd [#allocation9], %s278
          %s280 = sshll.u32 [#allocation8], 4
          %s281 = int_to_ptr.vmem [resolvable:$true] %s280
          %286 = dma.hbm_to_vmem [thread:$0]  %s7, 1024, %s281, [#allocation9], 64, 64, 4
        $region40: #{tpu_custom_call.1} parent=11 // pred_fallthru
          _
      $region12: #{tpu_custom_call.1} parent=5 // pred_fallthru
        _
      %p287 = scmp.lt.s32.totalorder %s22, 2
      // Predicated region
      $region41: #{tpu_custom_call.1} parent=5 // pred_check
        %p288 = pneg %p287
      $region42: #{tpu_custom_call.1} parent=5 // pred_check_branch
        %290 = sbr.rel (%p288) target = $region44
      $region43: #{tpu_custom_call.1} parent=5 // pred_region
        // Predicated region
        $region45: #{tpu_custom_call.1} parent=43 // pred_check
          %p291 = pneg %p42
        $region46: #{tpu_custom_call.1} parent=43 // pred_check_branch
          %293 = sbr.rel (%p291) target = $region48
        $region47: #{tpu_custom_call.1} parent=43 // pred_region
          %s294 = sand.u32 %s32, 1
          %s295 = scalar_lea.sflag [#allocation3], %s294
          %s296 = sand.u32 %s32, 1
          %s297 = smul.addr %s296, 64
          %s298 = scalar_lea.vmem [#allocation2], %s297
          %s299 = smul.u32 16, %s22
          %s301 = ssub.s32 1024, 1024
          %302 = vsyncadd %s295, %s301
          %s303 = smul.addr %s299, 64
          %s304 = scalar_lea.hbm %s0, %s303
          %s305 = sshll.u32 %s298, 4
          %s306 = int_to_ptr.vmem [resolvable:$true] %s305
          %311 = dma.hbm_to_vmem [thread:$0]  %s304, 1024, %s306, %s295, 64, 64, 4
        $region48: #{tpu_custom_call.1} parent=43 // pred_fallthru
          _
      $region44: #{tpu_custom_call.1} parent=5 // pred_fallthru
        _
      %p312 = scmp.le.s32.totalorder 1, %s22
      %p313 = scmp.lt.s32.totalorder %s22, 3
      %p314 = pnand %p312, %p313
      %p315 = pneg %p314
      // Predicated region
      $region49: #{tpu_custom_call.1} parent=5 // pred_check
        _
      $region50: #{tpu_custom_call.1} parent=5 // pred_check_branch
        %317 = sbr.rel (%p314) target = $region52
      $region51: #{tpu_custom_call.1} parent=5 // pred_region
        %s318 = ssub.s32 %s22, 1
        %s319 = sand.u32 %s35, 1
        %s320 = scalar_lea.sflag [#allocation3], %s319
        %s321 = sand.u32 %s35, 1
        %s322 = smul.addr %s321, 64
        %s323 = scalar_lea.vmem [#allocation2], %s322
        // Predicated region
        $region53: #{tpu_custom_call.1} parent=51 // pred_check
          %p324 = pneg %p48
        $region54: #{tpu_custom_call.1} parent=51 // pred_check_branch
          %326 = sbr.rel (%p324) target = $region56
        $region55: #{tpu_custom_call.1} parent=51 // pred_region
          %327 = dma.done %s320, 1024
        $region56: #{tpu_custom_call.1} parent=51 // pred_fallthru
          _
        // Predicated region
        $region57: #{tpu_custom_call.1} parent=51 // pred_check
          %p328 = pneg %p69
        $region58: #{tpu_custom_call.1} parent=51 // pred_check_branch
          %330 = sbr.rel (%p328) target = $region60
        $region59: #{tpu_custom_call.1} parent=51 // pred_region
          %331 = dma.done [#allocation6], 1024
        $region60: #{tpu_custom_call.1} parent=51 // pred_fallthru
          _
        // Predicated region
        $region61: #{tpu_custom_call.1} parent=51 // pred_check
          %p332 = pneg %p111
        $region62: #{tpu_custom_call.1} parent=51 // pred_check_branch
          %334 = sbr.rel (%p332) target = $region64
        $region63: #{tpu_custom_call.1} parent=51 // pred_region
          %335 = dma.done [#allocation6], 1024
        $region64: #{tpu_custom_call.1} parent=51 // pred_fallthru
          _
        // Predicated region
        $region65: #{tpu_custom_call.1} parent=51 // pred_check
          %p336 = pneg %p195
        $region66: #{tpu_custom_call.1} parent=51 // pred_check_branch
          %338 = sbr.rel (%p336) target = $region68
        $region67: #{tpu_custom_call.1} parent=51 // pred_region
          %339 = dma.done [#allocation9], 1024
        $region68: #{tpu_custom_call.1} parent=51 // pred_fallthru
          _
        %s340 = sand.u32 %s35, 1
        %s341 = scalar_lea.sflag [#allocation3], %s340
        %s342 = sand.u32 %s35, 1
        %s343 = smul.addr %s342, 64
        %s344 = scalar_lea.vmem [#allocation2], %s343
        %p345 = pneg %p48
        %p346 = pneg %p45
        %p347 = pneg %p69
        %p348 = pneg %p66
        %p349 = pneg %p90
        %p350 = pneg %p87
        %p351 = pneg %p111
        %p352 = pneg %p108
        %p353 = pneg %p132
        %p354 = pneg %p129
        %p355 = pneg %p153
        %p356 = pneg %p150
        %p357 = pneg %p174
        %p358 = pneg %p171
        %p359 = pneg %p195
        %p360 = pneg %p192
        %p361 = pneg %p221
        %p362 = pneg %p218
        %s363 = sand.u32 %s208, 1
        %s364 = scalar_lea.sflag [#allocation4], %s363
        %s365 = sand.u32 %s208, 1
        %s366 = smul.addr %s365, 64
        %s367 = scalar_lea.vmem [#allocation10], %s366
        %s368 = smul.u32 16, %s27
        %s369 = smul.u32 16, %s27
        %v371 = vld [vmem:[%s323] sm:$0xf]
        %v372 = vld [vmem:[%s323 + $0x4] sm:$0xf]
        %v373 = vld [vmem:[%s323 + $0x8] sm:$0xf]
        %v374 = vld [vmem:[%s323 + $0xc] sm:$0xf]
        %v375 = vld [vmem:[%s323 + $0x10] sm:$0xf]
        %v376 = vld [vmem:[%s323 + $0x14] sm:$0xf]
        %v377 = vld [vmem:[%s323 + $0x18] sm:$0xf]
        %v378 = vld [vmem:[%s323 + $0x1c] sm:$0xf]
        %v379 = vld [vmem:[%s323 + $0x20] sm:$0xf]
        %v380 = vld [vmem:[%s323 + $0x24] sm:$0xf]
        %v381 = vld [vmem:[%s323 + $0x28] sm:$0xf]
        %v382 = vld [vmem:[%s323 + $0x2c] sm:$0xf]
        %v383 = vld [vmem:[%s323 + $0x30] sm:$0xf]
        %v384 = vld [vmem:[%s323 + $0x34] sm:$0xf]
        %v385 = vld [vmem:[%s323 + $0x38] sm:$0xf]
        %v386 = vld [vmem:[%s323 + $0x3c] sm:$0xf]
        %v387 = vld [vmem:[#allocation5] sm:$0xf]
        %v388 = vld [vmem:[#allocation5 + $0x4] sm:$0xf]
        %v389 = vld [vmem:[#allocation5 + $0x8] sm:$0xf]
        %v390 = vld [vmem:[#allocation5 + $0xc] sm:$0xf]
        %v391 = vld [vmem:[#allocation5 + $0x10] sm:$0xf]
        %v392 = vld [vmem:[#allocation5 + $0x14] sm:$0xf]
        %v393 = vld [vmem:[#allocation5 + $0x18] sm:$0xf]
        %v394 = vld [vmem:[#allocation5 + $0x1c] sm:$0xf]
        %v395 = vld [vmem:[#allocation5 + $0x20] sm:$0xf]
        %v396 = vld [vmem:[#allocation5 + $0x24] sm:$0xf]
        %v397 = vld [vmem:[#allocation5 + $0x28] sm:$0xf]
        %v398 = vld [vmem:[#allocation5 + $0x2c] sm:$0xf]
        %v399 = vld [vmem:[#allocation5 + $0x30] sm:$0xf]
        %v400 = vld [vmem:[#allocation5 + $0x34] sm:$0xf]
        %v401 = vld [vmem:[#allocation5 + $0x38] sm:$0xf]
        %v402 = vld [vmem:[#allocation5 + $0x3c] sm:$0xf]
        %v403 = vld [vmem:[%s2] sm:$0x1]
        %v405 = vlaneseq
        %v406 = vshrl.u32 %v405, 7
        %v407 = vsub.s32 0, %v406
        %v408 = vrot.slane %v403, %v407
        %v426 = vunpack.c.l.b16 %v371
        %v427 = vunpack.c.l.b16 %v372
        %v428 = vunpack.c.l.b16 %v373
        %v429 = vunpack.c.l.b16 %v374
        %v430 = vunpack.c.l.b16 %v375
        %v431 = vunpack.c.l.b16 %v376
        %v432 = vunpack.c.l.b16 %v377
        %v433 = vunpack.c.l.b16 %v378
        %v434 = vunpack.c.l.b16 %v379
        %v435 = vunpack.c.l.b16 %v380
        %v436 = vunpack.c.l.b16 %v381
        %v437 = vunpack.c.l.b16 %v382
        %v438 = vunpack.c.l.b16 %v383
        %v439 = vunpack.c.l.b16 %v384
        %v440 = vunpack.c.l.b16 %v385
        %v441 = vunpack.c.l.b16 %v386
        %v442 = vpack.c.b16 %v427, %v426
        %v443 = vpack.c.b16 %v429, %v428
        %v444 = vpack.c.b16 %v431, %v430
        %v445 = vpack.c.b16 %v433, %v432
        %v446 = vpack.c.b16 %v435, %v434
        %v447 = vpack.c.b16 %v437, %v436
        %v448 = vpack.c.b16 %v439, %v438
        %v449 = vpack.c.b16 %v441, %v440
        %v474 = vunpack.c.l.b16 %v387
        %v475 = vunpack.c.l.b16 %v388
        %v476 = vunpack.c.l.b16 %v389
        %v477 = vunpack.c.l.b16 %v390
        %v478 = vunpack.c.l.b16 %v391
        %v479 = vunpack.c.l.b16 %v392
        %v480 = vunpack.c.l.b16 %v393
        %v481 = vunpack.c.l.b16 %v394
        %v482 = vunpack.c.l.b16 %v395
        %v483 = vunpack.c.l.b16 %v396
        %v484 = vunpack.c.l.b16 %v397
        %v485 = vunpack.c.l.b16 %v398
        %v486 = vunpack.c.l.b16 %v399
        %v487 = vunpack.c.l.b16 %v400
        %v488 = vunpack.c.l.b16 %v401
        %v489 = vunpack.c.l.b16 %v402
        %v490 = vpack.c.b16 %v475, %v474
        %v491 = vpack.c.b16 %v477, %v476
        %v492 = vpack.c.b16 %v479, %v478
        %v493 = vpack.c.b16 %v481, %v480
        %v494 = vpack.c.b16 %v483, %v482
        %v495 = vpack.c.b16 %v485, %v484
        %v496 = vpack.c.b16 %v487, %v486
        %v497 = vpack.c.b16 %v489, %v488
        %506 = vmatprep.subr.bf16.mxu0 0
        %507 = vmatpush1.bf16.msra.mxu0 %v490
        %508 = vmatprep.subr.bf16.mxu0 0
        %509 = vmatpush1.bf16.msra.mxu0 %v491
        %510 = vmatprep.subr.bf16.mxu0 0
        %511 = vmatpush1.bf16.msra.mxu0 %v492
        %512 = vmatprep.subr.bf16.mxu0 0
        %513 = vmatpush1.bf16.msra.mxu0 %v493
        %514 = vmatprep.subr.bf16.mxu0 0
        %515 = vmatpush1.bf16.msra.mxu0 %v494
        %516 = vmatprep.subr.bf16.mxu0 0
        %517 = vmatpush1.bf16.msra.mxu0 %v495
        %518 = vmatprep.subr.bf16.mxu0 0
        %519 = vmatpush1.bf16.msra.mxu0 %v496
        %520 = vmatprep.subr.bf16.mxu0 0
        %521 = vmatpush1.bf16.msra.mxu0 %v497
        %522 = vmatprep.subr.bf16.mxu0 0
        %523 = vmatpush1.bf16.msra.mxu0 0
        %524 = vmatprep.subr.bf16.mxu0 0
        %525 = vmatpush1.bf16.msra.mxu0 0
        %526 = vmatprep.subr.bf16.mxu0 0
        %527 = vmatpush1.bf16.msra.mxu0 0
        %528 = vmatprep.subr.bf16.mxu0 0
        %529 = vmatpush1.bf16.msra.mxu0 0
        %530 = vmatprep.subr.bf16.mxu0 0
        %531 = vmatpush1.bf16.msra.mxu0 0
        %532 = vmatprep.subr.bf16.mxu0 0
        %533 = vmatpush1.bf16.msra.mxu0 0
        %534 = vmatprep.subr.bf16.mxu0 0
        %535 = vmatpush1.bf16.msra.mxu0 0
        %536 = vmatprep.subr.bf16.mxu0 0
        %537 = vmatpush1.bf16.msra.mxu0 0
        %538 = vmatprep.mubr.bf16.mxu0 0
        %539 = vmatmul.mubr.bf16.gmra.mrb[0].mxu0 %v442
        %v540 = vpop.f32.mrb[0].mxu0
        %v541 = vadd.f32 %v408, %v540
        %v542 = vpop.f32.mrb[0].mxu0
        %v543 = vpop.f32.mrb[0].mxu0
        %v544 = vadd.f32 %v408, %v543
        %v545 = vpop.f32.mrb[0].mxu0
        %546 = vmatprep.mubr.bf16.mxu0 0
        %547 = vmatmul.mubr.bf16.gmra.mrb[0].mxu0 %v443
        %v548 = vpop.f32.mrb[0].mxu0
        %v549 = vadd.f32 %v408, %v548
        %v550 = vpop.f32.mrb[0].mxu0
        %v551 = vpop.f32.mrb[0].mxu0
        %v552 = vadd.f32 %v408, %v551
        %v553 = vpop.f32.mrb[0].mxu0
        %554 = vmatprep.mubr.bf16.mxu0 0
        %555 = vmatmul.mubr.bf16.gmra.mrb[0].mxu0 %v444
        %v556 = vpop.f32.mrb[0].mxu0
        %v557 = vadd.f32 %v408, %v556
        %v558 = vpop.f32.mrb[0].mxu0
        %v559 = vpop.f32.mrb[0].mxu0
        %v560 = vadd.f32 %v408, %v559
        %v561 = vpop.f32.mrb[0].mxu0
        %562 = vmatprep.mubr.bf16.mxu0 0
        %563 = vmatmul.mubr.bf16.gmra.mrb[0].mxu0 %v445
        %v564 = vpop.f32.mrb[0].mxu0
        %v565 = vadd.f32 %v408, %v564
        %v566 = vpop.f32.mrb[0].mxu0
        %v567 = vpop.f32.mrb[0].mxu0
        %v568 = vadd.f32 %v408, %v567
        %v569 = vpop.f32.mrb[0].mxu0
        %570 = vmatprep.mubr.bf16.mxu0 0
        %571 = vmatmul.mubr.bf16.gmra.mrb[0].mxu0 %v446
        %v572 = vpop.f32.mrb[0].mxu0
        %v573 = vadd.f32 %v408, %v572
        %v574 = vpop.f32.mrb[0].mxu0
        %v575 = vpop.f32.mrb[0].mxu0
        %v576 = vadd.f32 %v408, %v575
        %v577 = vpop.f32.mrb[0].mxu0
        %578 = vmatprep.mubr.bf16.mxu0 0
        %579 = vmatmul.mubr.bf16.gmra.mrb[0].mxu0 %v447
        %v580 = vpop.f32.mrb[0].mxu0
        %v581 = vadd.f32 %v408, %v580
        %v582 = vpop.f32.mrb[0].mxu0
        %v583 = vpop.f32.mrb[0].mxu0
        %v584 = vadd.f32 %v408, %v583
        %v585 = vpop.f32.mrb[0].mxu0
        %586 = vmatprep.mubr.bf16.mxu0 0
        %587 = vmatmul.mubr.bf16.gmra.mrb[0].mxu0 %v448
        %v588 = vpop.f32.mrb[0].mxu0
        %v589 = vadd.f32 %v408, %v588
        %v590 = vpop.f32.mrb[0].mxu0
        %v591 = vpop.f32.mrb[0].mxu0
        %v592 = vadd.f32 %v408, %v591
        %v593 = vpop.f32.mrb[0].mxu0
        %594 = vmatprep.mubr.bf16.mxu0 0
        %595 = vmatmul.mubr.bf16.gmra.mrb[0].mxu0 %v449
        %v596 = vpop.f32.mrb[0].mxu0
        %v597 = vadd.f32 %v408, %v596
        %v598 = vpop.f32.mrb[0].mxu0
        %v599 = vpop.f32.mrb[0].mxu0
        %v600 = vadd.f32 %v408, %v599
        %v601 = vpop.f32.mrb[0].mxu0
        %602 = vdwg.mxu0
        %v603 = vmax.f32 %v541, 0.0
        %v604 = vmax.f32 %v544, 0.0
        %v605 = vmax.f32 %v549, 0.0
        %v606 = vmax.f32 %v552, 0.0
        %v607 = vmax.f32 %v557, 0.0
        %v608 = vmax.f32 %v560, 0.0
        %v609 = vmax.f32 %v565, 0.0
        %v610 = vmax.f32 %v568, 0.0
        %v611 = vmax.f32 %v573, 0.0
        %v612 = vmax.f32 %v576, 0.0
        %v613 = vmax.f32 %v581, 0.0
        %v614 = vmax.f32 %v584, 0.0
        %v615 = vmax.f32 %v589, 0.0
        %v616 = vmax.f32 %v592, 0.0
        %v617 = vmax.f32 %v597, 0.0
        %v618 = vmax.f32 %v600, 0.0
        %v619 = vpack.c.bf16 %v604, %v603
        %v620 = vpack.c.bf16 %v606, %v605
        %v621 = vpack.c.bf16 %v608, %v607
        %v622 = vpack.c.bf16 %v610, %v609
        %v623 = vpack.c.bf16 %v612, %v611
        %v624 = vpack.c.bf16 %v614, %v613
        %v625 = vpack.c.bf16 %v616, %v615
        %v626 = vpack.c.bf16 %v618, %v617
        %v627 = vld [vmem:[#allocation7] sm:$0xf]
        %v628 = vld [vmem:[#allocation7 + $0x4] sm:$0xf]
        %v629 = vld [vmem:[#allocation7 + $0x8] sm:$0xf]
        %v630 = vld [vmem:[#allocation7 + $0xc] sm:$0xf]
        %v631 = vld [vmem:[#allocation7 + $0x10] sm:$0xf]
        %v632 = vld [vmem:[#allocation7 + $0x14] sm:$0xf]
        %v633 = vld [vmem:[#allocation7 + $0x18] sm:$0xf]
        %v634 = vld [vmem:[#allocation7 + $0x1c] sm:$0xf]
        %v635 = vld [vmem:[#allocation7 + $0x20] sm:$0xf]
        %v636 = vld [vmem:[#allocation7 + $0x24] sm:$0xf]
        %v637 = vld [vmem:[#allocation7 + $0x28] sm:$0xf]
        %v638 = vld [vmem:[#allocation7 + $0x2c] sm:$0xf]
        %v639 = vld [vmem:[#allocation7 + $0x30] sm:$0xf]
        %v640 = vld [vmem:[#allocation7 + $0x34] sm:$0xf]
        %v641 = vld [vmem:[#allocation7 + $0x38] sm:$0xf]
        %v642 = vld [vmem:[#allocation7 + $0x3c] sm:$0xf]
        %v643 = vld [vmem:[%s4] sm:$0x1]
        %v645 = vlaneseq
        %v646 = vshrl.u32 %v645, 7
        %v647 = vsub.s32 0, %v646
        %v648 = vrot.slane %v643, %v647
        %v666 = vunpack.c.l.b16 %v627
        %v667 = vunpack.c.l.b16 %v628
        %v668 = vunpack.c.l.b16 %v629
        %v669 = vunpack.c.l.b16 %v630
        %v670 = vunpack.c.l.b16 %v631
        %v671 = vunpack.c.l.b16 %v632
        %v672 = vunpack.c.l.b16 %v633
        %v673 = vunpack.c.l.b16 %v634
        %v674 = vunpack.c.l.b16 %v635
        %v675 = vunpack.c.l.b16 %v636
        %v676 = vunpack.c.l.b16 %v637
        %v677 = vunpack.c.l.b16 %v638
        %v678 = vunpack.c.l.b16 %v639
        %v679 = vunpack.c.l.b16 %v640
        %v680 = vunpack.c.l.b16 %v641
        %v681 = vunpack.c.l.b16 %v642
        %v682 = vpack.c.b16 %v667, %v666
        %v683 = vpack.c.b16 %v669, %v668
        %v684 = vpack.c.b16 %v671, %v670
        %v685 = vpack.c.b16 %v673, %v672
        %v686 = vpack.c.b16 %v675, %v674
        %v687 = vpack.c.b16 %v677, %v676
        %v688 = vpack.c.b16 %v679, %v678
        %v689 = vpack.c.b16 %v681, %v680
        %698 = vmatprep.subr.bf16.mxu0 0
        %699 = vmatpush1.bf16.msra.mxu0 %v682
        %700 = vmatprep.subr.bf16.mxu0 0
        %701 = vmatpush1.bf16.msra.mxu0 %v683
        %702 = vmatprep.subr.bf16.mxu0 0
        %703 = vmatpush1.bf16.msra.mxu0 %v684
        %704 = vmatprep.subr.bf16.mxu0 0
        %705 = vmatpush1.bf16.msra.mxu0 %v685
        %706 = vmatprep.subr.bf16.mxu0 0
        %707 = vmatpush1.bf16.msra.mxu0 %v686
        %708 = vmatprep.subr.bf16.mxu0 0
        %709 = vmatpush1.bf16.msra.mxu0 %v687
        %710 = vmatprep.subr.bf16.mxu0 0
        %711 = vmatpush1.bf16.msra.mxu0 %v688
        %712 = vmatprep.subr.bf16.mxu0 0
        %713 = vmatpush1.bf16.msra.mxu0 %v689
        %714 = vmatprep.subr.bf16.mxu0 0
        %715 = vmatpush1.bf16.msra.mxu0 0
        %716 = vmatprep.subr.bf16.mxu0 0
        %717 = vmatpush1.bf16.msra.mxu0 0
        %718 = vmatprep.subr.bf16.mxu0 0
        %719 = vmatpush1.bf16.msra.mxu0 0
        %720 = vmatprep.subr.bf16.mxu0 0
        %721 = vmatpush1.bf16.msra.mxu0 0
        %722 = vmatprep.subr.bf16.mxu0 0
        %723 = vmatpush1.bf16.msra.mxu0 0
        %724 = vmatprep.subr.bf16.mxu0 0
        %725 = vmatpush1.bf16.msra.mxu0 0
        %726 = vmatprep.subr.bf16.mxu0 0
        %727 = vmatpush1.bf16.msra.mxu0 0
        %728 = vmatprep.subr.bf16.mxu0 0
        %729 = vmatpush1.bf16.msra.mxu0 0
        %730 = vmatprep.mubr.bf16.mxu0 0
        %731 = vmatmul.mubr.bf16.gmra.mrb[0].mxu0 %v619
        %v732 = vpop.f32.mrb[0].mxu0
        %v733 = vadd.f32 %v648, %v732
        %v734 = vpop.f32.mrb[0].mxu0
        %v735 = vpop.f32.mrb[0].mxu0
        %v736 = vadd.f32 %v648, %v735
        %v737 = vpop.f32.mrb[0].mxu0
        %738 = vmatprep.mubr.bf16.mxu0 0
        %739 = vmatmul.mubr.bf16.gmra.mrb[0].mxu0 %v620
        %v740 = vpop.f32.mrb[0].mxu0
        %v741 = vadd.f32 %v648, %v740
        %v742 = vpop.f32.mrb[0].mxu0
        %v743 = vpop.f32.mrb[0].mxu0
        %v744 = vadd.f32 %v648, %v743
        %v745 = vpop.f32.mrb[0].mxu0
        %746 = vmatprep.mubr.bf16.mxu0 0
        %747 = vmatmul.mubr.bf16.gmra.mrb[0].mxu0 %v621
        %v748 = vpop.f32.mrb[0].mxu0
        %v749 = vadd.f32 %v648, %v748
        %v750 = vpop.f32.mrb[0].mxu0
        %v751 = vpop.f32.mrb[0].mxu0
        %v752 = vadd.f32 %v648, %v751
        %v753 = vpop.f32.mrb[0].mxu0
        %754 = vmatprep.mubr.bf16.mxu0 0
        %755 = vmatmul.mubr.bf16.gmra.mrb[0].mxu0 %v622
        %v756 = vpop.f32.mrb[0].mxu0
        %v757 = vadd.f32 %v648, %v756
        %v758 = vpop.f32.mrb[0].mxu0
        %v759 = vpop.f32.mrb[0].mxu0
        %v760 = vadd.f32 %v648, %v759
        %v761 = vpop.f32.mrb[0].mxu0
        %762 = vmatprep.mubr.bf16.mxu0 0
        %763 = vmatmul.mubr.bf16.gmra.mrb[0].mxu0 %v623
        %v764 = vpop.f32.mrb[0].mxu0
        %v765 = vadd.f32 %v648, %v764
        %v766 = vpop.f32.mrb[0].mxu0
        %v767 = vpop.f32.mrb[0].mxu0
        %v768 = vadd.f32 %v648, %v767
        %v769 = vpop.f32.mrb[0].mxu0
        %770 = vmatprep.mubr.bf16.mxu0 0
        %771 = vmatmul.mubr.bf16.gmra.mrb[0].mxu0 %v624
        %v772 = vpop.f32.mrb[0].mxu0
        %v773 = vadd.f32 %v648, %v772
        %v774 = vpop.f32.mrb[0].mxu0
        %v775 = vpop.f32.mrb[0].mxu0
        %v776 = vadd.f32 %v648, %v775
        %v777 = vpop.f32.mrb[0].mxu0
        %778 = vmatprep.mubr.bf16.mxu0 0
        %779 = vmatmul.mubr.bf16.gmra.mrb[0].mxu0 %v625
        %v780 = vpop.f32.mrb[0].mxu0
        %v781 = vadd.f32 %v648, %v780
        %v782 = vpop.f32.mrb[0].mxu0
        %v783 = vpop.f32.mrb[0].mxu0
        %v784 = vadd.f32 %v648, %v783
        %v785 = vpop.f32.mrb[0].mxu0
        %786 = vmatprep.mubr.bf16.mxu0 0
        %787 = vmatmul.mubr.bf16.gmra.mrb[0].mxu0 %v626
        %v788 = vpop.f32.mrb[0].mxu0
        %v789 = vadd.f32 %v648, %v788
        %v790 = vpop.f32.mrb[0].mxu0
        %v791 = vpop.f32.mrb[0].mxu0
        %v792 = vadd.f32 %v648, %v791
        %v793 = vpop.f32.mrb[0].mxu0
        %794 = vdwg.mxu0
        %v795 = vld [vmem:[%s5] sm:$0x1]
        %v796 = vld [vmem:[%s6] sm:$0x1]
        %797 = vadd.xlane.f32.xlu0 %v733
        %v798 = vpop.xlane.xlu0 %797
        %799 = vadd.xlane.f32.xlu0 %v736
        %v800 = vpop.xlane.xlu0 %799
        %801 = vadd.xlane.f32.xlu0 %v741
        %v802 = vpop.xlane.xlu0 %801
        %803 = vadd.xlane.f32.xlu0 %v744
        %v804 = vpop.xlane.xlu0 %803
        %805 = vadd.xlane.f32.xlu0 %v749
        %v806 = vpop.xlane.xlu0 %805
        %807 = vadd.xlane.f32.xlu0 %v752
        %v808 = vpop.xlane.xlu0 %807
        %809 = vadd.xlane.f32.xlu0 %v757
        %v810 = vpop.xlane.xlu0 %809
        %811 = vadd.xlane.f32.xlu0 %v760
        %v812 = vpop.xlane.xlu0 %811
        %813 = vadd.xlane.f32.xlu0 %v765
        %v814 = vpop.xlane.xlu0 %813
        %815 = vadd.xlane.f32.xlu0 %v768
        %v816 = vpop.xlane.xlu0 %815
        %817 = vadd.xlane.f32.xlu0 %v773
        %v818 = vpop.xlane.xlu0 %817
        %819 = vadd.xlane.f32.xlu0 %v776
        %v820 = vpop.xlane.xlu0 %819
        %821 = vadd.xlane.f32.xlu0 %v781
        %v822 = vpop.xlane.xlu0 %821
        %823 = vadd.xlane.f32.xlu0 %v784
        %v824 = vpop.xlane.xlu0 %823
        %825 = vadd.xlane.f32.xlu0 %v789
        %v826 = vpop.xlane.xlu0 %825
        %827 = vadd.xlane.f32.xlu0 %v792
        %v828 = vpop.xlane.xlu0 %827
        %v829 = vrcp.pop 128.0
        %v830 = vmul.f32 %v798, %v829
        %v831 = vmul.f32 %v800, %v829
        %v832 = vmul.f32 %v802, %v829
        %v833 = vmul.f32 %v804, %v829
        %v834 = vmul.f32 %v806, %v829
        %v835 = vmul.f32 %v808, %v829
        %v836 = vmul.f32 %v810, %v829
        %v837 = vmul.f32 %v812, %v829
        %v838 = vmul.f32 %v814, %v829
        %v839 = vmul.f32 %v816, %v829
        %v840 = vmul.f32 %v818, %v829
        %v841 = vmul.f32 %v820, %v829
        %v842 = vmul.f32 %v822, %v829
        %v843 = vmul.f32 %v824, %v829
        %v844 = vmul.f32 %v826, %v829
        %v845 = vmul.f32 %v828, %v829
        %v846 = vsub.f32 %v733, %v830
        %v847 = vsub.f32 %v736, %v831
        %v848 = vsub.f32 %v741, %v832
        %v849 = vsub.f32 %v744, %v833
        %v850 = vsub.f32 %v749, %v834
        %v851 = vsub.f32 %v752, %v835
        %v852 = vsub.f32 %v757, %v836
        %v853 = vsub.f32 %v760, %v837
        %v854 = vsub.f32 %v765, %v838
        %v855 = vsub.f32 %v768, %v839
        %v856 = vsub.f32 %v773, %v840
        %v857 = vsub.f32 %v776, %v841
        %v858 = vsub.f32 %v781, %v842
        %v859 = vsub.f32 %v784, %v843
        %v860 = vsub.f32 %v789, %v844
        %v861 = vsub.f32 %v792, %v845
        %v862 = vmul.f32 %v846, %v846
        %v863 = vmul.f32 %v847, %v847
        %v864 = vmul.f32 %v848, %v848
        %v865 = vmul.f32 %v849, %v849
        %v866 = vmul.f32 %v850, %v850
        %v867 = vmul.f32 %v851, %v851
        %v868 = vmul.f32 %v852, %v852
        %v869 = vmul.f32 %v853, %v853
        %v870 = vmul.f32 %v854, %v854
        %v871 = vmul.f32 %v855, %v855
        %v872 = vmul.f32 %v856, %v856
        %v873 = vmul.f32 %v857, %v857
        %v874 = vmul.f32 %v858, %v858
        %v875 = vmul.f32 %v859, %v859
        %v876 = vmul.f32 %v860, %v860
        %v877 = vmul.f32 %v861, %v861
        %878 = vadd.xlane.f32.xlu0 %v862
        %v879 = vpop.xlane.xlu0 %878
        %880 = vadd.xlane.f32.xlu0 %v863
        %v881 = vpop.xlane.xlu0 %880
        %882 = vadd.xlane.f32.xlu0 %v864
        %v883 = vpop.xlane.xlu0 %882
        %884 = vadd.xlane.f32.xlu0 %v865
        %v885 = vpop.xlane.xlu0 %884
        %886 = vadd.xlane.f32.xlu0 %v866
        %v887 = vpop.xlane.xlu0 %886
        %888 = vadd.xlane.f32.xlu0 %v867
        %v889 = vpop.xlane.xlu0 %888
        %890 = vadd.xlane.f32.xlu0 %v868
        %v891 = vpop.xlane.xlu0 %890
        %892 = vadd.xlane.f32.xlu0 %v869
        %v893 = vpop.xlane.xlu0 %892
        %894 = vadd.xlane.f32.xlu0 %v870
        %v895 = vpop.xlane.xlu0 %894
        %896 = vadd.xlane.f32.xlu0 %v871
        %v897 = vpop.xlane.xlu0 %896
        %898 = vadd.xlane.f32.xlu0 %v872
        %v899 = vpop.xlane.xlu0 %898
        %900 = vadd.xlane.f32.xlu0 %v873
        %v901 = vpop.xlane.xlu0 %900
        %902 = vadd.xlane.f32.xlu0 %v874
        %v903 = vpop.xlane.xlu0 %902
        %904 = vadd.xlane.f32.xlu0 %v875
        %v905 = vpop.xlane.xlu0 %904
        %906 = vadd.xlane.f32.xlu0 %v876
        %v907 = vpop.xlane.xlu0 %906
        %908 = vadd.xlane.f32.xlu0 %v877
        %v909 = vpop.xlane.xlu0 %908
        %v910 = vmul.f32 %v879, %v829
        %v911 = vmul.f32 %v881, %v829
        %v912 = vmul.f32 %v883, %v829
        %v913 = vmul.f32 %v885, %v829
        %v914 = vmul.f32 %v887, %v829
        %v915 = vmul.f32 %v889, %v829
        %v916 = vmul.f32 %v891, %v829
        %v917 = vmul.f32 %v893, %v829
        %v918 = vmul.f32 %v895, %v829
        %v919 = vmul.f32 %v897, %v829
        %v920 = vmul.f32 %v899, %v829
        %v921 = vmul.f32 %v901, %v829
        %v922 = vmul.f32 %v903, %v829
        %v923 = vmul.f32 %v905, %v829
        %v924 = vmul.f32 %v907, %v829
        %v925 = vmul.f32 %v909, %v829
        %v926 = vadd.f32 %v910, 1e-05
        %v927 = vadd.f32 %v911, 1e-05
        %v928 = vadd.f32 %v912, 1e-05
        %v929 = vadd.f32 %v913, 1e-05
        %v930 = vadd.f32 %v914, 1e-05
        %v931 = vadd.f32 %v915, 1e-05
        %v932 = vadd.f32 %v916, 1e-05
        %v933 = vadd.f32 %v917, 1e-05
        %v934 = vadd.f32 %v918, 1e-05
        %v935 = vadd.f32 %v919, 1e-05
        %v936 = vadd.f32 %v920, 1e-05
        %v937 = vadd.f32 %v921, 1e-05
        %v938 = vadd.f32 %v922, 1e-05
        %v939 = vadd.f32 %v923, 1e-05
        %v940 = vadd.f32 %v924, 1e-05
        %v941 = vadd.f32 %v925, 1e-05
        %v942 = vrsqrt.pop %v926
        %v943 = vrsqrt.pop %v927
        %v944 = vrsqrt.pop %v928
        %v945 = vrsqrt.pop %v929
        %v946 = vrsqrt.pop %v930
        %v947 = vrsqrt.pop %v931
        %v948 = vrsqrt.pop %v932
        %v949 = vrsqrt.pop %v933
        %v950 = vrsqrt.pop %v934
        %v951 = vrsqrt.pop %v935
        %v952 = vrsqrt.pop %v936
        %v953 = vrsqrt.pop %v937
        %v954 = vrsqrt.pop %v938
        %v955 = vrsqrt.pop %v939
        %v956 = vrsqrt.pop %v940
        %v957 = vrsqrt.pop %v941
        %v958 = vmul.f32 %v846, %v942
        %v959 = vmul.f32 %v847, %v943
        %v960 = vmul.f32 %v848, %v944
        %v961 = vmul.f32 %v849, %v945
        %v962 = vmul.f32 %v850, %v946
        %v963 = vmul.f32 %v851, %v947
        %v964 = vmul.f32 %v852, %v948
        %v965 = vmul.f32 %v853, %v949
        %v966 = vmul.f32 %v854, %v950
        %v967 = vmul.f32 %v855, %v951
        %v968 = vmul.f32 %v856, %v952
        %v969 = vmul.f32 %v857, %v953
        %v970 = vmul.f32 %v858, %v954
        %v971 = vmul.f32 %v859, %v955
        %v972 = vmul.f32 %v860, %v956
        %v973 = vmul.f32 %v861, %v957
        %v975 = vlaneseq
        %v976 = vshrl.u32 %v975, 7
        %v977 = vsub.s32 0, %v976
        %v978 = vrot.slane %v795, %v977
        %v980 = vmul.f32 %v958, %v978
        %v981 = vmul.f32 %v959, %v978
        %v982 = vmul.f32 %v960, %v978
        %v983 = vmul.f32 %v961, %v978
        %v984 = vmul.f32 %v962, %v978
        %v985 = vmul.f32 %v963, %v978
        %v986 = vmul.f32 %v964, %v978
        %v987 = vmul.f32 %v965, %v978
        %v988 = vmul.f32 %v966, %v978
        %v989 = vmul.f32 %v967, %v978
        %v990 = vmul.f32 %v968, %v978
        %v991 = vmul.f32 %v969, %v978
        %v992 = vmul.f32 %v970, %v978
        %v993 = vmul.f32 %v971, %v978
        %v994 = vmul.f32 %v972, %v978
        %v995 = vmul.f32 %v973, %v978
        %v997 = vlaneseq
        %v998 = vshrl.u32 %v997, 7
        %v999 = vsub.s32 0, %v998
        %v1000 = vrot.slane %v796, %v999
        %v1002 = vadd.f32 %v980, %v1000
        %v1003 = vadd.f32 %v981, %v1000
        %v1004 = vadd.f32 %v982, %v1000
        %v1005 = vadd.f32 %v983, %v1000
        %v1006 = vadd.f32 %v984, %v1000
        %v1007 = vadd.f32 %v985, %v1000
        %v1008 = vadd.f32 %v986, %v1000
        %v1009 = vadd.f32 %v987, %v1000
        %v1010 = vadd.f32 %v988, %v1000
        %v1011 = vadd.f32 %v989, %v1000
        %v1012 = vadd.f32 %v990, %v1000
        %v1013 = vadd.f32 %v991, %v1000
        %v1014 = vadd.f32 %v992, %v1000
        %v1015 = vadd.f32 %v993, %v1000
        %v1016 = vadd.f32 %v994, %v1000
        %v1017 = vadd.f32 %v995, %v1000
        %v1018 = vpack.c.bf16 %v1003, %v1002
        %v1019 = vpack.c.bf16 %v1005, %v1004
        %v1020 = vpack.c.bf16 %v1007, %v1006
        %v1021 = vpack.c.bf16 %v1009, %v1008
        %v1022 = vpack.c.bf16 %v1011, %v1010
        %v1023 = vpack.c.bf16 %v1013, %v1012
        %v1024 = vpack.c.bf16 %v1015, %v1014
        %v1025 = vpack.c.bf16 %v1017, %v1016
        %v1026 = vld [vmem:[#allocation8] sm:$0xf]
        %v1027 = vld [vmem:[#allocation8 + $0x4] sm:$0xf]
        %v1028 = vld [vmem:[#allocation8 + $0x8] sm:$0xf]
        %v1029 = vld [vmem:[#allocation8 + $0xc] sm:$0xf]
        %v1030 = vld [vmem:[#allocation8 + $0x10] sm:$0xf]
        %v1031 = vld [vmem:[#allocation8 + $0x14] sm:$0xf]
        %v1032 = vld [vmem:[#allocation8 + $0x18] sm:$0xf]
        %v1033 = vld [vmem:[#allocation8 + $0x1c] sm:$0xf]
        %v1034 = vld [vmem:[#allocation8 + $0x20] sm:$0xf]
        %v1035 = vld [vmem:[#allocation8 + $0x24] sm:$0xf]
        %v1036 = vld [vmem:[#allocation8 + $0x28] sm:$0xf]
        %v1037 = vld [vmem:[#allocation8 + $0x2c] sm:$0xf]
        %v1038 = vld [vmem:[#allocation8 + $0x30] sm:$0xf]
        %v1039 = vld [vmem:[#allocation8 + $0x34] sm:$0xf]
        %v1040 = vld [vmem:[#allocation8 + $0x38] sm:$0xf]
        %v1041 = vld [vmem:[#allocation8 + $0x3c] sm:$0xf]
        %v1058 = vunpack.c.l.b16 %v1026
        %v1059 = vunpack.c.l.b16 %v1027
        %v1060 = vunpack.c.l.b16 %v1028
        %v1061 = vunpack.c.l.b16 %v1029
        %v1062 = vunpack.c.l.b16 %v1030
        %v1063 = vunpack.c.l.b16 %v1031
        %v1064 = vunpack.c.l.b16 %v1032
        %v1065 = vunpack.c.l.b16 %v1033
        %v1066 = vunpack.c.l.b16 %v1034
        %v1067 = vunpack.c.l.b16 %v1035
        %v1068 = vunpack.c.l.b16 %v1036
        %v1069 = vunpack.c.l.b16 %v1037
        %v1070 = vunpack.c.l.b16 %v1038
        %v1071 = vunpack.c.l.b16 %v1039
        %v1072 = vunpack.c.l.b16 %v1040
        %v1073 = vunpack.c.l.b16 %v1041
        %v1074 = vpack.c.b16 %v1059, %v1058
        %v1075 = vpack.c.b16 %v1061, %v1060
        %v1076 = vpack.c.b16 %v1063, %v1062
        %v1077 = vpack.c.b16 %v1065, %v1064
        %v1078 = vpack.c.b16 %v1067, %v1066
        %v1079 = vpack.c.b16 %v1069, %v1068
        %v1080 = vpack.c.b16 %v1071, %v1070
        %v1081 = vpack.c.b16 %v1073, %v1072
        %1090 = vmatprep.subr.bf16.mxu0 0
        %1091 = vmatpush1.bf16.msra.mxu0 %v1074
        %1092 = vmatprep.subr.bf16.mxu0 0
        %1093 = vmatpush1.bf16.msra.mxu0 %v1075
        %1094 = vmatprep.subr.bf16.mxu0 0
        %1095 = vmatpush1.bf16.msra.mxu0 %v1076
        %1096 = vmatprep.subr.bf16.mxu0 0
        %1097 = vmatpush1.bf16.msra.mxu0 %v1077
        %1098 = vmatprep.subr.bf16.mxu0 0
        %1099 = vmatpush1.bf16.msra.mxu0 %v1078
        %1100 = vmatprep.subr.bf16.mxu0 0
        %1101 = vmatpush1.bf16.msra.mxu0 %v1079
        %1102 = vmatprep.subr.bf16.mxu0 0
        %1103 = vmatpush1.bf16.msra.mxu0 %v1080
        %1104 = vmatprep.subr.bf16.mxu0 0
        %1105 = vmatpush1.bf16.msra.mxu0 %v1081
        %1106 = vmatprep.subr.bf16.mxu0 0
        %1107 = vmatpush1.bf16.msra.mxu0 0
        %1108 = vmatprep.subr.bf16.mxu0 0
        %1109 = vmatpush1.bf16.msra.mxu0 0
        %1110 = vmatprep.subr.bf16.mxu0 0
        %1111 = vmatpush1.bf16.msra.mxu0 0
        %1112 = vmatprep.subr.bf16.mxu0 0
        %1113 = vmatpush1.bf16.msra.mxu0 0
        %1114 = vmatprep.subr.bf16.mxu0 0
        %1115 = vmatpush1.bf16.msra.mxu0 0
        %1116 = vmatprep.subr.bf16.mxu0 0
        %1117 = vmatpush1.bf16.msra.mxu0 0
        %1118 = vmatprep.subr.bf16.mxu0 0
        %1119 = vmatpush1.bf16.msra.mxu0 0
        %1120 = vmatprep.subr.bf16.mxu0 0
        %1121 = vmatpush1.bf16.msra.mxu0 0
        %1122 = vmatprep.mubr.bf16.mxu0 0
        %1123 = vmatmul.mubr.bf16.gmra.mrb[0].mxu0 %v1018
        %v1124 = vpop.f32.mrb[0].mxu0
        %v1125 = vadd.f32 0.0, %v1124
        %v1126 = vpop.f32.mrb[0].mxu0
        %v1127 = vpop.f32.mrb[0].mxu0
        %v1128 = vadd.f32 0.0, %v1127
        %v1129 = vpop.f32.mrb[0].mxu0
        %1130 = vmatprep.mubr.bf16.mxu0 0
        %1131 = vmatmul.mubr.bf16.gmra.mrb[0].mxu0 %v1019
        %v1132 = vpop.f32.mrb[0].mxu0
        %v1133 = vadd.f32 0.0, %v1132
        %v1134 = vpop.f32.mrb[0].mxu0
        %v1135 = vpop.f32.mrb[0].mxu0
        %v1136 = vadd.f32 0.0, %v1135
        %v1137 = vpop.f32.mrb[0].mxu0
        %1138 = vmatprep.mubr.bf16.mxu0 0
        %1139 = vmatmul.mubr.bf16.gmra.mrb[0].mxu0 %v1020
        %v1140 = vpop.f32.mrb[0].mxu0
        %v1141 = vadd.f32 0.0, %v1140
        %v1142 = vpop.f32.mrb[0].mxu0
        %v1143 = vpop.f32.mrb[0].mxu0
        %v1144 = vadd.f32 0.0, %v1143
        %v1145 = vpop.f32.mrb[0].mxu0
        %1146 = vmatprep.mubr.bf16.mxu0 0
        %1147 = vmatmul.mubr.bf16.gmra.mrb[0].mxu0 %v1021
        %v1148 = vpop.f32.mrb[0].mxu0
        %v1149 = vadd.f32 0.0, %v1148
        %v1150 = vpop.f32.mrb[0].mxu0
        %v1151 = vpop.f32.mrb[0].mxu0
        %v1152 = vadd.f32 0.0, %v1151
        %v1153 = vpop.f32.mrb[0].mxu0
        %1154 = vmatprep.mubr.bf16.mxu0 0
        %1155 = vmatmul.mubr.bf16.gmra.mrb[0].mxu0 %v1022
        %v1156 = vpop.f32.mrb[0].mxu0
        %v1157 = vadd.f32 0.0, %v1156
        %v1158 = vpop.f32.mrb[0].mxu0
        %v1159 = vpop.f32.mrb[0].mxu0
        %v1160 = vadd.f32 0.0, %v1159
        %v1161 = vpop.f32.mrb[0].mxu0
        %1162 = vmatprep.mubr.bf16.mxu0 0
        %1163 = vmatmul.mubr.bf16.gmra.mrb[0].mxu0 %v1023
        %v1164 = vpop.f32.mrb[0].mxu0
        %v1165 = vadd.f32 0.0, %v1164
        %v1166 = vpop.f32.mrb[0].mxu0
        %v1167 = vpop.f32.mrb[0].mxu0
        %v1168 = vadd.f32 0.0, %v1167
        %v1169 = vpop.f32.mrb[0].mxu0
        %1170 = vmatprep.mubr.bf16.mxu0 0
        %1171 = vmatmul.mubr.bf16.gmra.mrb[0].mxu0 %v1024
        %v1172 = vpop.f32.mrb[0].mxu0
        %v1173 = vadd.f32 0.0, %v1172
        %v1174 = vpop.f32.mrb[0].mxu0
        %v1175 = vpop.f32.mrb[0].mxu0
        %v1176 = vadd.f32 0.0, %v1175
        %v1177 = vpop.f32.mrb[0].mxu0
        %1178 = vmatprep.mubr.bf16.mxu0 0
        %1179 = vmatmul.mubr.bf16.gmra.mrb[0].mxu0 %v1025
        %v1180 = vpop.f32.mrb[0].mxu0
        %v1181 = vadd.f32 0.0, %v1180
        %v1182 = vpop.f32.mrb[0].mxu0
        %v1183 = vpop.f32.mrb[0].mxu0
        %v1184 = vadd.f32 0.0, %v1183
        %v1185 = vpop.f32.mrb[0].mxu0
        %1186 = vdwg.mxu0
        %v1187 = vpack.c.bf16 %v1128, %v1125
        %v1188 = vpack.c.bf16 %v1136, %v1133
        %v1189 = vpack.c.bf16 %v1144, %v1141
        %v1190 = vpack.c.bf16 %v1152, %v1149
        %v1191 = vpack.c.bf16 %v1160, %v1157
        %v1192 = vpack.c.bf16 %v1168, %v1165
        %v1193 = vpack.c.bf16 %v1176, %v1173
        %v1194 = vpack.c.bf16 %v1184, %v1181
        %v1203 = vunpack.c.l.b16 %v1187
        %v1204 = vunpack.c.h.b16 %v1187
        %v1205 = vunpack.c.l.b16 %v1188
        %v1206 = vunpack.c.h.b16 %v1188
        %v1207 = vunpack.c.l.b16 %v1189
        %v1208 = vunpack.c.h.b16 %v1189
        %v1209 = vunpack.c.l.b16 %v1190
        %v1210 = vunpack.c.h.b16 %v1190
        %v1211 = vunpack.c.l.b16 %v1191
        %v1212 = vunpack.c.h.b16 %v1191
        %v1213 = vunpack.c.l.b16 %v1192
        %v1214 = vunpack.c.h.b16 %v1192
        %v1215 = vunpack.c.l.b16 %v1193
        %v1216 = vunpack.c.h.b16 %v1193
        %v1217 = vunpack.c.l.b16 %v1194
        %v1218 = vunpack.c.h.b16 %v1194
        %v1219 = vpack.c.b16 %v1203, %v1203
        %v1220 = vpack.c.b16 %v1204, %v1204
        %v1221 = vpack.c.b16 %v1205, %v1205
        %v1222 = vpack.c.b16 %v1206, %v1206
        %v1223 = vpack.c.b16 %v1207, %v1207
        %v1224 = vpack.c.b16 %v1208, %v1208
        %v1225 = vpack.c.b16 %v1209, %v1209
        %v1226 = vpack.c.b16 %v1210, %v1210
        %v1227 = vpack.c.b16 %v1211, %v1211
        %v1228 = vpack.c.b16 %v1212, %v1212
        %v1229 = vpack.c.b16 %v1213, %v1213
        %v1230 = vpack.c.b16 %v1214, %v1214
        %v1231 = vpack.c.b16 %v1215, %v1215
        %v1232 = vpack.c.b16 %v1216, %v1216
        %v1233 = vpack.c.b16 %v1217, %v1217
        %v1234 = vpack.c.b16 %v1218, %v1218
        %1251 = vst [vmem:[%s367] sm:$0xf] %v1219
        %1252 = vst [vmem:[%s367 + $0x4] sm:$0xf] %v1220
        %1253 = vst [vmem:[%s367 + $0x8] sm:$0xf] %v1221
        %1254 = vst [vmem:[%s367 + $0xc] sm:$0xf] %v1222
        %1255 = vst [vmem:[%s367 + $0x10] sm:$0xf] %v1223
        %1256 = vst [vmem:[%s367 + $0x14] sm:$0xf] %v1224
        %1257 = vst [vmem:[%s367 + $0x18] sm:$0xf] %v1225
        %1258 = vst [vmem:[%s367 + $0x1c] sm:$0xf] %v1226
        %1259 = vst [vmem:[%s367 + $0x20] sm:$0xf] %v1227
        %1260 = vst [vmem:[%s367 + $0x24] sm:$0xf] %v1228
        %1261 = vst [vmem:[%s367 + $0x28] sm:$0xf] %v1229
        %1262 = vst [vmem:[%s367 + $0x2c] sm:$0xf] %v1230
        %1263 = vst [vmem:[%s367 + $0x30] sm:$0xf] %v1231
        %1264 = vst [vmem:[%s367 + $0x34] sm:$0xf] %v1232
        %1265 = vst [vmem:[%s367 + $0x38] sm:$0xf] %v1233
        %1266 = vst [vmem:[%s367 + $0x3c] sm:$0xf] %v1234
        %s1267 = sand.u32 %s208, 1
        %s1268 = scalar_lea.sflag [#allocation4], %s1267
        %s1269 = sand.u32 %s208, 1
        %s1270 = smul.addr %s1269, 64
        %s1271 = scalar_lea.vmem [#allocation10], %s1270
        // Predicated region
        $region69: #{tpu_custom_call.1} parent=51 // pred_check
          %p1272 = pneg %p218
        $region70: #{tpu_custom_call.1} parent=51 // pred_check_branch
          %1274 = sbr.rel (%p1272) target = $region72
        $region71: #{tpu_custom_call.1} parent=51 // pred_region
          %s1275 = smul.u32 16, %s27
          %s1277 = ssub.s32 1024, 1024
          %1278 = vsyncadd %s1268, %s1277
          %s1279 = smul.addr %s1275, 64
          %s1280 = scalar_lea.hbm %s8, %s1279
          %s1281 = sshll.u32 %s1271, 4
          %s1282 = int_to_ptr.vmem [resolvable:$true] %s1281
          %1287 = dma.vmem_to_hbm [thread:$0]  %s1282, 1024, %s1280, %s1268, 64, 64, 4
        $region72: #{tpu_custom_call.1} parent=51 // pred_fallthru
          _
      $region52: #{tpu_custom_call.1} parent=5 // pred_fallthru
        _
      %p1288 = scmp.le.s32.totalorder 2, %s22
      // Predicated region
      $region73: #{tpu_custom_call.1} parent=5 // pred_check
        %p1289 = pneg %p1288
      $region74: #{tpu_custom_call.1} parent=5 // pred_check_branch
        %1291 = sbr.rel (%p1289) target = $region76
      $region75: #{tpu_custom_call.1} parent=5 // pred_region
        %s1292 = ssub.s32 %s22, 2
        // Predicated region
        $region77: #{tpu_custom_call.1} parent=75 // pred_check
          %p1293 = pneg %p224
        $region78: #{tpu_custom_call.1} parent=75 // pred_check_branch
          %1295 = sbr.rel (%p1293) target = $region80
        $region79: #{tpu_custom_call.1} parent=75 // pred_region
          %s1296 = sand.u32 %s209, 1
          %s1297 = scalar_lea.sflag [#allocation4], %s1296
          %s1298 = sand.u32 %s209, 1
          %s1299 = smul.addr %s1298, 64
          %s1300 = scalar_lea.vmem [#allocation10], %s1299
          %1301 = dma.done %s1297, 1024
        $region80: #{tpu_custom_call.1} parent=75 // pred_fallthru
          _
      $region76: #{tpu_custom_call.1} parent=5 // pred_fallthru
        _
    $region6: #{tpu_custom_call.1} parent=1 // loop_footer
      %s26 = sadd.s32 1, %s22
    $region7: #{tpu_custom_call.1} parent=1 // loop_footer_branch
      %21 = sbr.rel target = $region3
    $region8: #{tpu_custom_call.1} parent=1 // loop_exit
      _
    %1302 = vsyncpa [#allocation3], 1
    %s1303 = scalar_lea.sflag [#allocation3], 1
    %1304 = vsyncpa %s1303, 1
    %1305 = vsyncpa [#allocation6], 1
    %1306 = vsyncpa [#allocation9], 1
    %1307 = vsyncpa [#allocation4], 1
    %s1308 = scalar_lea.sflag [#allocation4], 1
    %1309 = vsyncpa %s1308, 1

</llo_original>
